<compile_context>
chip_gen: v7x
topology: tpu7x:2x2x1
jax: 0.10.0
libtpu: 0.0.40
codegen_flags: <defaults>
</compile_context>

<pallas_src>
import functools

import jax
import jax.numpy as jnp
from jax import lax
from jax.experimental import pallas as pl
from jax.experimental.pallas import tpu as pltpu


def ticket_kernel(ids_ref, masks_ref, pool_ref, table_ref, w3_ref, bc_ref,
                  wf_ref, bf_ref, o_ref, *, embed_mode: str):
    """Fused embedding + conv1d(k=3,pad=1) + ReLU + mean-pool + fc for one batch tile.

    ids_ref:   (N, 1)       int32 token ids, N = TB * L (flattened batch-tile x seq)
    masks_ref: (N, 2)       f32 {start, end} sequence-boundary masks (grid-invariant)
    pool_ref:  (TB, N)      f32 segment (mean-pool) matrix (grid-invariant)
    table_ref: (Vpad, E)    embedding table, vocab padded to a multiple of 128
    w3_ref:    (3, E, E)    conv taps, w3[k, ci, co] = torch_conv_w[co, ci, k]
    bc_ref:    (1, E)       conv bias (f32)
    wf_ref:    (E, Tpad)    fc weight, pre-transposed, lane-padded
    bf_ref:    (1, Tpad)    fc bias, lane-padded (f32)
    o_ref:     (TB, Tpad)   logits (caller slices [:, :T])
    """
    f32 = jnp.float32
    N = ids_ref.shape[0]
    Vpad, E = table_ref.shape
    TB = pool_ref.shape[0]
    L = N // TB
    mm = table_ref.dtype                          # matmul operand dtype (f32 or bf16)

    ids = ids_ref[...]                            # (N, 1) int32

    if embed_mode == "take":
        # Real gather on the VMEM-resident table: O(N*E) instead of O(N*V) work.
        emb = jnp.take(table_ref[...], ids[:, 0], axis=0).astype(f32)          # (N, E)
    else:
        # Small-vocab fallback: one-hot built directly in the matmul dtype over the
        # 128-padded vocab, "gathered" on the MXU (exact).
        # TODO(synk): for very large vocabularies (V*E >> VMEM) implement a
        # scalar-prefetch + make_async_copy row-gather from an HBM-resident table.
        viota = lax.broadcasted_iota(jnp.int32, (1, Vpad), 1)
        onehot = (ids == viota).astype(mm)                                      # (N, Vpad)
        emb = jnp.dot(onehot, table_ref[...], preferred_element_type=f32)       # (N, E)

    # Shifted neighbours from the XLU; precomputed masks zero the taps that would
    # otherwise wrap across sequence boundaries inside the flattened tile.
    prev = pltpu.roll(emb, shift=1, axis=0) * masks_ref[:, 0:1]                 # emb[i-1]
    nxt = pltpu.roll(emb, shift=N - 1, axis=0) * masks_ref[:, 1:2]              # emb[i+1]

    # Conv1d(k=3, pad=1): three accumulated (N,E)@(E,E) MXU dots (no concat transient).
    # Elementwise work stays in f32 (safe on v5e); operands are cast only at the dot.
    conv = jnp.dot(emb.astype(mm), w3_ref[1], preferred_element_type=f32)
    conv = conv + jnp.dot(prev.astype(mm), w3_ref[0], preferred_element_type=f32)
    conv = conv + jnp.dot(nxt.astype(mm), w3_ref[2], preferred_element_type=f32)
    conv = jnp.maximum(conv + bc_ref[...], 0.0)                                  # (N, E) f32

    # Mean over the sequence: resident segment matrix; exact 1/L applied to the f32 sum.
    pooled = jnp.dot(pool_ref[...], conv, preferred_element_type=f32) * (1.0 / L)  # (TB, E)

    # Final linear layer; Tpad is a lane-dense multiple of 128.
    logits = jnp.dot(pooled.astype(mm), wf_ref[...], preferred_element_type=f32) + bf_ref[...]
    o_ref[...] = logits.astype(o_ref.dtype)


def _vmem_limit_bytes():
    """Generation-aware VMEM limit: ~48 MiB on 64-MiB parts (v7x), ~96 MiB on 128-MiB parts."""
    try:
        cap = int(pltpu.get_tpu_info().vmem_capacity_bytes)
    except Exception:
        cap = 64 * 1024 * 1024                     # conservative (v7x-sized) default
    return min(100 * 1024 * 1024, (cap * 3) // 4)


def _pick_tile_b(B, L, E, Vpad, mm_itemsize, vmem_limit, onehot):
    """Choose the batch tile so N = tile_b*L is ~2048 rows, bounded by the VMEM budget."""
    if B <= 8:
        return B                                   # single tile; blocks equal full array dims
    tb = max(8, min(B, max(1, 2048 // max(L, 1))))
    tb = max(8, (tb // 8) * 8)                     # sublane-aligned tiles

    def per_tile_bytes(t):
        n = t * L
        b = 5 * n * E * 4 + n * 2 * 4 + t * n * 4  # f32 activations + masks + pool matrix
        if onehot:
            b += n * Vpad * mm_itemsize            # one-hot transient
        return b

    while tb > 8 and per_tile_bytes(tb) > vmem_limit // 2:
        tb = max(8, ((tb // 2) // 8) * 8)

    # Prefer an even number of batch tiles so both TensorCores of a v7x megacore get work.
    nb = -(-B // tb)
    if nb > 1 and nb % 2 == 1:
        tb_even = max(8, ((-(-B // (nb + 1)) + 7) // 8) * 8)
        if (-(-B // tb_even)) % 2 == 0:
            tb = tb_even
    return tb


def ticket_classifier_forward(text, emb_table, conv_w, conv_b, fc_w, fc_b, *,
                              tile_b=None, matmul_dtype=jnp.float32,
                              embed_mode="onehot", single_buffer_weights=True):
    """JAX wrapper reproducing TicketClassifier.forward with a single fused Pallas kernel.

    text:      (B, L) int token ids
    emb_table: (V, E)
    conv_w:    (E, E, 3)  torch Conv1d layout (out, in, k)
    conv_b:    (E,)
    fc_w:      (T, E)     torch Linear layout (out, in)
    fc_b:      (T,)
    matmul_dtype: jnp.bfloat16 on v6e/v7x doubles MXU throughput (f32 accumulation is kept,
                  boundary masking and the 1/L mean stay in f32).
    embed_mode: "take" (real gather on VMEM table) or "onehot" (MXU one-hot, small vocab).
    returns:   (B, T) float32 logits
    """
    B, L = text.shape
    V, E = emb_table.shape
    T = fc_w.shape[0]
    f32 = jnp.float32

    Vpad = max(128, ((V + 127) // 128) * 128)      # lane-dense / full-tile contraction dim
    Tpad = max(128, ((T + 127) // 128) * 128)      # lane-dense output store

    mm_itemsize = jnp.dtype(matmul_dtype).itemsize
    vmem_limit = _vmem_limit_bytes()

    if tile_b is None:
        tile_b = _pick_tile_b(B, L, E, Vpad, mm_itemsize, vmem_limit,
                              onehot=(embed_mode == "onehot"))
    nb = pl.cdiv(B, tile_b)
    B_pad = nb * tile_b
    if B_pad != B:
        # TODO(synk): padded rows flow through the full compute before being sliced away.
        text = jnp.pad(text, ((0, B_pad - B), (0, 0)))
    # Clip ids like an embedding lookup would (out-of-range ids would otherwise map to zero).
    ids = jnp.clip(text, 0, V - 1).reshape(B_pad * L, 1).astype(jnp.int32)

    n_blk = tile_b * L

    # Grid-invariant constants, built ONCE on the host (not regenerated every grid step).
    pos = jnp.arange(n_blk, dtype=jnp.int32) % L
    masks = jnp.stack([(pos != 0), (pos != L - 1)], axis=1).astype(f32)        # (n_blk, 2)
    seg = jnp.arange(n_blk, dtype=jnp.int32) // L
    pool = (seg[None, :] == jnp.arange(tile_b, dtype=jnp.int32)[:, None]).astype(f32)  # (tile_b, n_blk)

    table = jnp.pad(emb_table, ((0, Vpad - V), (0, 0))).astype(matmul_dtype)   # (Vpad, E)
    w3 = jnp.transpose(conv_w, (2, 1, 0)).astype(matmul_dtype)                 # (3, E_in, E_out)
    bc = conv_b.reshape(1, E).astype(f32)
    wfT = jnp.pad(jnp.transpose(fc_w), ((0, 0), (0, Tpad - T))).astype(matmul_dtype)   # (E, Tpad)
    bf = jnp.pad(fc_b, (0, Tpad - T)).reshape(1, Tpad).astype(f32)

    def _const_spec(shape):
        n = len(shape)
        idx = lambda b: (0,) * n
        if single_buffer_weights:
            # Grid-invariant block: a single VMEM buffer is enough (halves resident footprint).
            return pl.BlockSpec(shape, idx, pipeline_mode=pl.Buffered(1))
        return pl.BlockSpec(shape, idx)

    grid_spec = pltpu.PrefetchScalarGridSpec(
        num_scalar_prefetch=0,
        grid=(nb,),
        in_specs=[
            pl.BlockSpec((n_blk, 1), lambda b: (b, 0)),      # token ids: tiled over batch
            _const_spec((n_blk, 2)),                          # boundary masks
            _const_spec((tile_b, n_blk)),                     # mean-pool segment matrix
            _const_spec((Vpad, E)),                           # embedding table
            _const_spec((3, E, E)),                           # conv taps
            _const_spec((1, E)),                              # conv bias
            _const_spec((E, Tpad)),                           # fc weight (pre-transposed)
            _const_spec((1, Tpad)),                           # fc bias
        ],
        out_specs=pl.BlockSpec((tile_b, Tpad), lambda b: (b, 0)),
    )

    kernel = functools.partial(ticket_kernel, embed_mode=embed_mode)
    out = pl.pallas_call(
        kernel,
        out_shape=jax.ShapeDtypeStruct((B_pad, Tpad), f32),
        grid_spec=grid_spec,
        compiler_params=pltpu.CompilerParams(
            dimension_semantics=("parallel",),                # batch tiles split across TCs
            vmem_limit_bytes=vmem_limit,
        ),
    )(ids, masks, pool, table, w3, bc, wfT, bf)

    return out[:B, :T]


def reference_forward(text, emb_table, conv_w, conv_b, fc_w, fc_b):
    """Pure-JAX reference mirroring the PyTorch module (for correctness check)."""
    emb = jnp.take(emb_table, text, axis=0)                   # (B, L, E)
    x = jnp.transpose(emb, (0, 2, 1))                         # (B, E, L)
    conv = lax.conv_general_dilated(
        x, conv_w, window_strides=(1,), padding=((1, 1),),
        dimension_numbers=("NCH", "OIH", "NCH"))
    conv = jax.nn.relu(conv + conv_b[None, :, None])
    pooled = conv.mean(axis=2)                                # (B, E)
    return pooled @ fc_w.T + fc_b


if __name__ == "__main__":
    # Small, deterministic configuration consistent with the module.
    vocab_size, embed_dim, target_size = 50, 32, 5
    batch, seq_len = 2, 8

    key = jax.random.PRNGKey(0)
    k_emb, k_cw, k_cb, k_fw, k_fb, k_txt = jax.random.split(key, 6)

    emb_table = jax.random.normal(k_emb, (vocab_size, embed_dim), jnp.float32) * 0.1
    conv_w = jax.random.normal(k_cw, (embed_dim, embed_dim, 3), jnp.float32) * 0.1
    conv_b = jax.random.normal(k_cb, (embed_dim,), jnp.float32) * 0.1
    fc_w = jax.random.normal(k_fw, (target_size, embed_dim), jnp.float32) * 0.1
    fc_b = jax.random.normal(k_fb, (target_size,), jnp.float32) * 0.1

    text = jax.random.randint(k_txt, (batch, seq_len), 0, vocab_size, jnp.int32)

    ref = jax.block_until_ready(
        reference_forward(text, emb_table, conv_w, conv_b, fc_w, fc_b))

    # Prefer the real-gather + single-buffered-weights configuration; fall back to the MXU
    # one-hot path (always lowers) if this jax/libtpu build rejects either feature.
    configs = (
        dict(embed_mode="take", single_buffer_weights=True),
        dict(embed_mode="onehot", single_buffer_weights=True),
        dict(embed_mode="onehot", single_buffer_weights=False),
    )
    out, last_err = None, None
    for cfg in configs:
        try:
            cand = jax.block_until_ready(
                ticket_classifier_forward(text, emb_table, conv_w, conv_b, fc_w, fc_b, **cfg))
        except Exception as err:                    # unsupported feature -> try next config
            last_err = err
            continue
        if cand.shape == (batch, target_size) and bool(
                jnp.allclose(cand, ref, atol=2e-2, rtol=2e-2)):
            out = cand
            break
        last_err = AssertionError(
            f"config {cfg}: max abs err {float(jnp.max(jnp.abs(cand - ref)))}")
    if out is None:
        raise last_err if last_err is not None else RuntimeError("no configuration succeeded")

    print("KERNEL_OK")
</pallas_src>

<mosaic_0001>
module attributes {stable_mosaic.version = 11 : i64} {
  func.func @ticket_kernel(%arg0: i32, %arg1: memref<16x1xi32, #tpu.memory_space<vmem>>, %arg2: memref<16x2xf32, #tpu.memory_space<vmem>>, %arg3: memref<2x16xf32, #tpu.memory_space<vmem>>, %arg4: memref<128x32xf32, #tpu.memory_space<vmem>>, %arg5: memref<3x32x32xf32, #tpu.memory_space<vmem>>, %arg6: memref<1x32xf32, #tpu.memory_space<vmem>>, %arg7: memref<32x128xf32, #tpu.memory_space<vmem>>, %arg8: memref<1x128xf32, #tpu.memory_space<vmem>>, %arg9: memref<2x128xf32, #tpu.memory_space<vmem>>) attributes {dimension_semantics = [#tpu.dimension_semantics<parallel>], iteration_bounds = array<i64: 1>, scalar_prefetch = 0 : i64, scratch_operands = 0 : i64, tpu.core_type = #tpu.core_type<tc>, window_params = [{transform_indices = @transform_0, window_bounds = array<i64: 16, 1>}, {pipeline_mode = #tpu.pipeline_mode<synchronous>, transform_indices = @transform_1, window_bounds = array<i64: 16, 2>}, {pipeline_mode = #tpu.pipeline_mode<synchronous>, transform_indices = @transform_2, window_bounds = array<i64: 2, 16>}, {pipeline_mode = #tpu.pipeline_mode<synchronous>, transform_indices = @transform_3, window_bounds = array<i64: 128, 32>}, {pipeline_mode = #tpu.pipeline_mode<synchronous>, transform_indices = @transform_4, window_bounds = array<i64: 3, 32, 32>}, {pipeline_mode = #tpu.pipeline_mode<synchronous>, transform_indices = @transform_5, window_bounds = array<i64: 1, 32>}, {pipeline_mode = #tpu.pipeline_mode<synchronous>, transform_indices = @transform_6, window_bounds = array<i64: 32, 128>}, {pipeline_mode = #tpu.pipeline_mode<synchronous>, transform_indices = @transform_7, window_bounds = array<i64: 1, 128>}, {transform_indices = @transform_8, window_bounds = array<i64: 2, 128>}]} {
    %c0 = arith.constant 0 : index
    %c0_0 = arith.constant 0 : index
    %0 = vector.load %arg1[%c0, %c0_0] : memref<16x1xi32, #tpu.memory_space<vmem>>, vector<16x1xi32>
    %1 = tpu.iota {dimensions = array<i32: 1>} : vector<1x128xi32>
    %2 = vector.broadcast %0 : vector<16x1xi32> to vector<16x128xi32>
    %3 = vector.broadcast %1 : vector<1x128xi32> to vector<16x128xi32>
    %4 = arith.cmpi eq, %2, %3 : vector<16x128xi32>
    %5 = arith.extui %4 : vector<16x128xi1> to vector<16x128xi32>
    %6 = arith.sitofp %5 : vector<16x128xi32> to vector<16x128xf32>
    %c0_1 = arith.constant 0 : index
    %c0_2 = arith.constant 0 : index
    %7 = vector.load %arg4[%c0_1, %c0_2] : memref<128x32xf32, #tpu.memory_space<vmem>>, vector<128x32xf32>
    %cst = arith.constant dense<0.000000e+00> : vector<16x32xf32>
    %8 = tpu.matmul %6, %7, %cst {dimension_numbers = #tpu.dot_dimension_numbers<[1], [0], [0], [1], [0, 0, 1, 1], [], []>} : vector<16x128xf32>, vector<128x32xf32>, vector<16x32xf32> -> vector<16x32xf32>
    %c1_i32 = arith.constant 1 : i32
    %9 = tpu.dynamic_rotate %8 by %c1_i32 dim 0 : vector<16x32xf32>, i32 -> vector<16x32xf32>
    %c0_3 = arith.constant 0 : index
    %c0_4 = arith.constant 0 : index
    %10 = vector.load %arg2[%c0_3, %c0_4] : memref<16x2xf32, #tpu.memory_space<vmem>>, vector<16x1xf32>
    %11 = vector.broadcast %10 : vector<16x1xf32> to vector<16x32xf32>
    %12 = arith.mulf %9, %11 : vector<16x32xf32>
    %c15_i32 = arith.constant 15 : i32
    %13 = tpu.dynamic_rotate %8 by %c15_i32 dim 0 : vector<16x32xf32>, i32 -> vector<16x32xf32>
    %c0_5 = arith.constant 0 : index
    %c1 = arith.constant 1 : index
    %14 = vector.load %arg2[%c0_5, %c1] : memref<16x2xf32, #tpu.memory_space<vmem>>, vector<16x1xf32>
    %15 = vector.broadcast %14 : vector<16x1xf32> to vector<16x32xf32>
    %16 = arith.mulf %13, %15 : vector<16x32xf32>
    %c1_6 = arith.constant 1 : index
    %c0_7 = arith.constant 0 : index
    %c0_8 = arith.constant 0 : index
    %17 = vector.load %arg5[%c1_6, %c0_7, %c0_8] : memref<3x32x32xf32, #tpu.memory_space<vmem>>, vector<1x32x32xf32>
    %18 = vector.shape_cast %17 : vector<1x32x32xf32> to vector<32x32xf32>
    %cst_9 = arith.constant dense<0.000000e+00> : vector<16x32xf32>
    %19 = tpu.matmul %8, %18, %cst_9 {dimension_numbers = #tpu.dot_dimension_numbers<[1], [0], [0], [1], [0, 0, 1, 1], [], []>} : vector<16x32xf32>, vector<32x32xf32>, vector<16x32xf32> -> vector<16x32xf32>
    %c0_10 = arith.constant 0 : index
    %c0_11 = arith.constant 0 : index
    %c0_12 = arith.constant 0 : index
    %20 = vector.load %arg5[%c0_10, %c0_11, %c0_12] : memref<3x32x32xf32, #tpu.memory_space<vmem>>, vector<1x32x32xf32>
    %21 = vector.shape_cast %20 : vector<1x32x32xf32> to vector<32x32xf32>
    %cst_13 = arith.constant dense<0.000000e+00> : vector<16x32xf32>
    %22 = tpu.matmul %12, %21, %cst_13 {dimension_numbers = #tpu.dot_dimension_numbers<[1], [0], [0], [1], [0, 0, 1, 1], [], []>} : vector<16x32xf32>, vector<32x32xf32>, vector<16x32xf32> -> vector<16x32xf32>
    %23 = arith.addf %19, %22 : vector<16x32xf32>
    %c2 = arith.constant 2 : index
    %c0_14 = arith.constant 0 : index
    %c0_15 = arith.constant 0 : index
    %24 = vector.load %arg5[%c2, %c0_14, %c0_15] : memref<3x32x32xf32, #tpu.memory_space<vmem>>, vector<1x32x32xf32>
    %25 = vector.shape_cast %24 : vector<1x32x32xf32> to vector<32x32xf32>
    %cst_16 = arith.constant dense<0.000000e+00> : vector<16x32xf32>
    %26 = tpu.matmul %16, %25, %cst_16 {dimension_numbers = #tpu.dot_dimension_numbers<[1], [0], [0], [1], [0, 0, 1, 1], [], []>} : vector<16x32xf32>, vector<32x32xf32>, vector<16x32xf32> -> vector<16x32xf32>
    %27 = arith.addf %23, %26 : vector<16x32xf32>
    %c0_17 = arith.constant 0 : index
    %c0_18 = arith.constant 0 : index
    %28 = vector.load %arg6[%c0_17, %c0_18] : memref<1x32xf32, #tpu.memory_space<vmem>>, vector<1x32xf32>
    %29 = vector.broadcast %28 : vector<1x32xf32> to vector<16x32xf32>
    %30 = arith.addf %27, %29 : vector<16x32xf32>
    %cst_19 = arith.constant 0.000000e+00 : f32
    %31 = vector.broadcast %cst_19 : f32 to vector<16x32xf32>
    %32 = arith.maximumf %30, %31 : vector<16x32xf32>
    %c0_20 = arith.constant 0 : index
    %c0_21 = arith.constant 0 : index
    %33 = vector.load %arg3[%c0_20, %c0_21] : memref<2x16xf32, #tpu.memory_space<vmem>>, vector<2x16xf32>
    %cst_22 = arith.constant dense<0.000000e+00> : vector<2x32xf32>
    %34 = tpu.matmul %33, %32, %cst_22 {dimension_numbers = #tpu.dot_dimension_numbers<[1], [0], [0], [1], [0, 0, 1, 1], [], []>} : vector<2x16xf32>, vector<16x32xf32>, vector<2x32xf32> -> vector<2x32xf32>
    %cst_23 = arith.constant 1.250000e-01 : f32
    %35 = vector.broadcast %cst_23 : f32 to vector<2x32xf32>
    %36 = arith.mulf %34, %35 : vector<2x32xf32>
    %c0_24 = arith.constant 0 : index
    %c0_25 = arith.constant 0 : index
    %37 = vector.load %arg7[%c0_24, %c0_25] : memref<32x128xf32, #tpu.memory_space<vmem>>, vector<32x128xf32>
    %cst_26 = arith.constant dense<0.000000e+00> : vector<2x128xf32>
    %38 = tpu.matmul %36, %37, %cst_26 {dimension_numbers = #tpu.dot_dimension_numbers<[1], [0], [0], [1], [0, 0, 1, 1], [], []>} : vector<2x32xf32>, vector<32x128xf32>, vector<2x128xf32> -> vector<2x128xf32>
    %c0_27 = arith.constant 0 : index
    %c0_28 = arith.constant 0 : index
    %39 = vector.load %arg8[%c0_27, %c0_28] : memref<1x128xf32, #tpu.memory_space<vmem>>, vector<1x128xf32>
    %40 = vector.broadcast %39 : vector<1x128xf32> to vector<2x128xf32>
    %41 = arith.addf %38, %40 : vector<2x128xf32>
    %c0_29 = arith.constant 0 : index
    %c0_30 = arith.constant 0 : index
    %42 = vector.load %arg9[%c0_29, %c0_30] : memref<2x128xf32, #tpu.memory_space<vmem>>, vector<2x128xf32>
    tpu.vector_store %arg9[%c0_29, %c0_30], %41 {strides = array<i32>} : memref<2x128xf32, #tpu.memory_space<vmem>>, vector<2x128xf32>,
    return
  }
  func.func @transform_0(%arg0: i32) -> (i32, i32) {
    %c0_i32 = arith.constant 0 : i32
    %c0_i32_0 = arith.constant 0 : i32
    return %arg0, %c0_i32 : i32, i32
  }
  func.func @transform_1(%arg0: i32) -> (i32, i32) {
    %c0_i32 = arith.constant 0 : i32
    %c0_i32_0 = arith.constant 0 : i32
    %c0_i32_1 = arith.constant 0 : i32
    return %c0_i32, %c0_i32_0 : i32, i32
  }
  func.func @transform_2(%arg0: i32) -> (i32, i32) {
    %c0_i32 = arith.constant 0 : i32
    %c0_i32_0 = arith.constant 0 : i32
    %c0_i32_1 = arith.constant 0 : i32
    return %c0_i32, %c0_i32_0 : i32, i32
  }
  func.func @transform_3(%arg0: i32) -> (i32, i32) {
    %c0_i32 = arith.constant 0 : i32
    %c0_i32_0 = arith.constant 0 : i32
    %c0_i32_1 = arith.constant 0 : i32
    return %c0_i32, %c0_i32_0 : i32, i32
  }
  func.func @transform_4(%arg0: i32) -> (i32, i32, i32) {
    %c0_i32 = arith.constant 0 : i32
    %c0_i32_0 = arith.constant 0 : i32
    %c0_i32_1 = arith.constant 0 : i32
    %c0_i32_2 = arith.constant 0 : i32
    return %c0_i32, %c0_i32_0, %c0_i32_1 : i32, i32, i32
  }
  func.func @transform_5(%arg0: i32) -> (i32, i32) {
    %c0_i32 = arith.constant 0 : i32
    %c0_i32_0 = arith.constant 0 : i32
    %c0_i32_1 = arith.constant 0 : i32
    return %c0_i32, %c0_i32_0 : i32, i32
  }
  func.func @transform_6(%arg0: i32) -> (i32, i32) {
    %c0_i32 = arith.constant 0 : i32
    %c0_i32_0 = arith.constant 0 : i32
    %c0_i32_1 = arith.constant 0 : i32
    return %c0_i32, %c0_i32_0 : i32, i32
  }
  func.func @transform_7(%arg0: i32) -> (i32, i32) {
    %c0_i32 = arith.constant 0 : i32
    %c0_i32_0 = arith.constant 0 : i32
    %c0_i32_1 = arith.constant 0 : i32
    return %c0_i32, %c0_i32_0 : i32, i32
  }
  func.func @transform_8(%arg0: i32) -> (i32, i32) {
    %c0_i32 = arith.constant 0 : i32
    %c0_i32_0 = arith.constant 0 : i32
    return %arg0, %c0_i32 : i32, i32
  }
}

module attributes {stable_mosaic.version = 11 : i64} {
  func.func @ticket_kernel(%arg0: i32, %arg1: memref<16x1xi32, #tpu.memory_space<vmem>>, %arg2: memref<16x2xf32, #tpu.memory_space<vmem>>, %arg3: memref<2x16xf32, #tpu.memory_space<vmem>>, %arg4: memref<128x32xf32, #tpu.memory_space<vmem>>, %arg5: memref<3x32x32xf32, #tpu.memory_space<vmem>>, %arg6: memref<1x32xf32, #tpu.memory_space<vmem>>, %arg7: memref<32x128xf32, #tpu.memory_space<vmem>>, %arg8: memref<1x128xf32, #tpu.memory_space<vmem>>, %arg9: memref<2x128xf32, #tpu.memory_space<vmem>>) attributes {dimension_semantics = [#tpu.dimension_semantics<parallel>], iteration_bounds = array<i64: 1>, scalar_prefetch = 0 : i64, scratch_operands = 0 : i64, tpu.core_type = #tpu.core_type<tc>, window_params = [{transform_indices = @transform_0, window_bounds = array<i64: 16, 1>}, {pipeline_mode = #tpu.pipeline_mode<synchronous>, transform_indices = @transform_1, window_bounds = array<i64: 16, 2>}, {pipeline_mode = #tpu.pipeline_mode<synchronous>, transform_indices = @transform_2, window_bounds = array<i64: 2, 16>}, {pipeline_mode = #tpu.pipeline_mode<synchronous>, transform_indices = @transform_3, window_bounds = array<i64: 128, 32>}, {pipeline_mode = #tpu.pipeline_mode<synchronous>, transform_indices = @transform_4, window_bounds = array<i64: 3, 32, 32>}, {pipeline_mode = #tpu.pipeline_mode<synchronous>, transform_indices = @transform_5, window_bounds = array<i64: 1, 32>}, {pipeline_mode = #tpu.pipeline_mode<synchronous>, transform_indices = @transform_6, window_bounds = array<i64: 32, 128>}, {pipeline_mode = #tpu.pipeline_mode<synchronous>, transform_indices = @transform_7, window_bounds = array<i64: 1, 128>}, {transform_indices = @transform_8, window_bounds = array<i64: 2, 128>}]} {
    %c0 = arith.constant 0 : index
    %c0_0 = arith.constant 0 : index
    %0 = vector.load %arg1[%c0, %c0_0] : memref<16x1xi32, #tpu.memory_space<vmem>>, vector<16x1xi32>
    %1 = tpu.iota {dimensions = array<i32: 1>} : vector<1x128xi32>
    %2 = vector.broadcast %0 : vector<16x1xi32> to vector<16x128xi32>
    %3 = vector.broadcast %1 : vector<1x128xi32> to vector<16x128xi32>
    %4 = arith.cmpi eq, %2, %3 : vector<16x128xi32>
    %5 = arith.extui %4 : vector<16x128xi1> to vector<16x128xi32>
    %6 = arith.sitofp %5 : vector<16x128xi32> to vector<16x128xf32>
    %c0_1 = arith.constant 0 : index
    %c0_2 = arith.constant 0 : index
    %7 = vector.load %arg4[%c0_1, %c0_2] : memref<128x32xf32, #tpu.memory_space<vmem>>, vector<128x32xf32>
    %cst = arith.constant dense<0.000000e+00> : vector<16x32xf32>
    %8 = tpu.matmul %6, %7, %cst {dimension_numbers = #tpu.dot_dimension_numbers<[1], [0], [0], [1], [0, 0, 1, 1], [], []>} : vector<16x128xf32>, vector<128x32xf32>, vector<16x32xf32> -> vector<16x32xf32>
    %c1_i32 = arith.constant 1 : i32
    %9 = tpu.dynamic_rotate %8 by %c1_i32 dim 0 : vector<16x32xf32>, i32 -> vector<16x32xf32>
    %c0_3 = arith.constant 0 : index
    %c0_4 = arith.constant 0 : index
    %10 = vector.load %arg2[%c0_3, %c0_4] : memref<16x2xf32, #tpu.memory_space<vmem>>, vector<16x1xf32>
    %11 = vector.broadcast %10 : vector<16x1xf32> to vector<16x32xf32>
    %12 = arith.mulf %9, %11 : vector<16x32xf32>
    %c15_i32 = arith.constant 15 : i32
    %13 = tpu.dynamic_rotate %8 by %c15_i32 dim 0 : vector<16x32xf32>, i32 -> vector<16x32xf32>
    %c0_5 = arith.constant 0 : index
    %c1 = arith.constant 1 : index
    %14 = vector.load %arg2[%c0_5, %c1] : memref<16x2xf32, #tpu.memory_space<vmem>>, vector<16x1xf32>
    %15 = vector.broadcast %14 : vector<16x1xf32> to vector<16x32xf32>
    %16 = arith.mulf %13, %15 : vector<16x32xf32>
    %c1_6 = arith.constant 1 : index
    %c0_7 = arith.constant 0 : index
    %c0_8 = arith.constant 0 : index
    %17 = vector.load %arg5[%c1_6, %c0_7, %c0_8] : memref<3x32x32xf32, #tpu.memory_space<vmem>>, vector<1x32x32xf32>
    %18 = vector.shape_cast %17 : vector<1x32x32xf32> to vector<32x32xf32>
    %cst_9 = arith.constant dense<0.000000e+00> : vector<16x32xf32>
    %19 = tpu.matmul %8, %18, %cst_9 {dimension_numbers = #tpu.dot_dimension_numbers<[1], [0], [0], [1], [0, 0, 1, 1], [], []>} : vector<16x32xf32>, vector<32x32xf32>, vector<16x32xf32> -> vector<16x32xf32>
    %c0_10 = arith.constant 0 : index
    %c0_11 = arith.constant 0 : index
    %c0_12 = arith.constant 0 : index
    %20 = vector.load %arg5[%c0_10, %c0_11, %c0_12] : memref<3x32x32xf32, #tpu.memory_space<vmem>>, vector<1x32x32xf32>
    %21 = vector.shape_cast %20 : vector<1x32x32xf32> to vector<32x32xf32>
    %cst_13 = arith.constant dense<0.000000e+00> : vector<16x32xf32>
    %22 = tpu.matmul %12, %21, %cst_13 {dimension_numbers = #tpu.dot_dimension_numbers<[1], [0], [0], [1], [0, 0, 1, 1], [], []>} : vector<16x32xf32>, vector<32x32xf32>, vector<16x32xf32> -> vector<16x32xf32>
    %23 = arith.addf %19, %22 : vector<16x32xf32>
    %c2 = arith.constant 2 : index
    %c0_14 = arith.constant 0 : index
    %c0_15 = arith.constant 0 : index
    %24 = vector.load %arg5[%c2, %c0_14, %c0_15] : memref<3x32x32xf32, #tpu.memory_space<vmem>>, vector<1x32x32xf32>
    %25 = vector.shape_cast %24 : vector<1x32x32xf32> to vector<32x32xf32>
    %cst_16 = arith.constant dense<0.000000e+00> : vector<16x32xf32>
    %26 = tpu.matmul %16, %25, %cst_16 {dimension_numbers = #tpu.dot_dimension_numbers<[1], [0], [0], [1], [0, 0, 1, 1], [], []>} : vector<16x32xf32>, vector<32x32xf32>, vector<16x32xf32> -> vector<16x32xf32>
    %27 = arith.addf %23, %26 : vector<16x32xf32>
    %c0_17 = arith.constant 0 : index
    %c0_18 = arith.constant 0 : index
    %28 = vector.load %arg6[%c0_17, %c0_18] : memref<1x32xf32, #tpu.memory_space<vmem>>, vector<1x32xf32>
    %29 = vector.broadcast %28 : vector<1x32xf32> to vector<16x32xf32>
    %30 = arith.addf %27, %29 : vector<16x32xf32>
    %cst_19 = arith.constant 0.000000e+00 : f32
    %31 = vector.broadcast %cst_19 : f32 to vector<16x32xf32>
    %32 = arith.maximumf %30, %31 : vector<16x32xf32>
    %c0_20 = arith.constant 0 : index
    %c0_21 = arith.constant 0 : index
    %33 = vector.load %arg3[%c0_20, %c0_21] : memref<2x16xf32, #tpu.memory_space<vmem>>, vector<2x16xf32>
    %cst_22 = arith.constant dense<0.000000e+00> : vector<2x32xf32>
    %34 = tpu.matmul %33, %32, %cst_22 {dimension_numbers = #tpu.dot_dimension_numbers<[1], [0], [0], [1], [0, 0, 1, 1], [], []>} : vector<2x16xf32>, vector<16x32xf32>, vector<2x32xf32> -> vector<2x32xf32>
    %cst_23 = arith.constant 1.250000e-01 : f32
    %35 = vector.broadcast %cst_23 : f32 to vector<2x32xf32>
    %36 = arith.mulf %34, %35 : vector<2x32xf32>
    %c0_24 = arith.constant 0 : index
    %c0_25 = arith.constant 0 : index
    %37 = vector.load %arg7[%c0_24, %c0_25] : memref<32x128xf32, #tpu.memory_space<vmem>>, vector<32x128xf32>
    %cst_26 = arith.constant dense<0.000000e+00> : vector<2x128xf32>
    %38 = tpu.matmul %36, %37, %cst_26 {dimension_numbers = #tpu.dot_dimension_numbers<[1], [0], [0], [1], [0, 0, 1, 1], [], []>} : vector<2x32xf32>, vector<32x128xf32>, vector<2x128xf32> -> vector<2x128xf32>
    %c0_27 = arith.constant 0 : index
    %c0_28 = arith.constant 0 : index
    %39 = vector.load %arg8[%c0_27, %c0_28] : memref<1x128xf32, #tpu.memory_space<vmem>>, vector<1x128xf32>
    %40 = vector.broadcast %39 : vector<1x128xf32> to vector<2x128xf32>
    %41 = arith.addf %38, %40 : vector<2x128xf32>
    %c0_29 = arith.constant 0 : index
    %c0_30 = arith.constant 0 : index
    %42 = vector.load %arg9[%c0_29, %c0_30] : memref<2x128xf32, #tpu.memory_space<vmem>>, vector<2x128xf32>
    tpu.vector_store %arg9[%c0_29, %c0_30], %41 {strides = array<i32>} : memref<2x128xf32, #tpu.memory_space<vmem>>, vector<2x128xf32>,
    return
  }
  func.func @transform_0(%arg0: i32) -> (i32, i32) {
    %c0_i32 = arith.constant 0 : i32
    %c0_i32_0 = arith.constant 0 : i32
    return %arg0, %c0_i32 : i32, i32
  }
  func.func @transform_1(%arg0: i32) -> (i32, i32) {
    %c0_i32 = arith.constant 0 : i32
    %c0_i32_0 = arith.constant 0 : i32
    %c0_i32_1 = arith.constant 0 : i32
    return %c0_i32, %c0_i32_0 : i32, i32
  }
  func.func @transform_2(%arg0: i32) -> (i32, i32) {
    %c0_i32 = arith.constant 0 : i32
    %c0_i32_0 = arith.constant 0 : i32
    %c0_i32_1 = arith.constant 0 : i32
    return %c0_i32, %c0_i32_0 : i32, i32
  }
  func.func @transform_3(%arg0: i32) -> (i32, i32) {
    %c0_i32 = arith.constant 0 : i32
    %c0_i32_0 = arith.constant 0 : i32
    %c0_i32_1 = arith.constant 0 : i32
    return %c0_i32, %c0_i32_0 : i32, i32
  }
  func.func @transform_4(%arg0: i32) -> (i32, i32, i32) {
    %c0_i32 = arith.constant 0 : i32
    %c0_i32_0 = arith.constant 0 : i32
    %c0_i32_1 = arith.constant 0 : i32
    %c0_i32_2 = arith.constant 0 : i32
    return %c0_i32, %c0_i32_0, %c0_i32_1 : i32, i32, i32
  }
  func.func @transform_5(%arg0: i32) -> (i32, i32) {
    %c0_i32 = arith.constant 0 : i32
    %c0_i32_0 = arith.constant 0 : i32
    %c0_i32_1 = arith.constant 0 : i32
    return %c0_i32, %c0_i32_0 : i32, i32
  }
  func.func @transform_6(%arg0: i32) -> (i32, i32) {
    %c0_i32 = arith.constant 0 : i32
    %c0_i32_0 = arith.constant 0 : i32
    %c0_i32_1 = arith.constant 0 : i32
    return %c0_i32, %c0_i32_0 : i32, i32
  }
  func.func @transform_7(%arg0: i32) -> (i32, i32) {
    %c0_i32 = arith.constant 0 : i32
    %c0_i32_0 = arith.constant 0 : i32
    %c0_i32_1 = arith.constant 0 : i32
    return %c0_i32, %c0_i32_0 : i32, i32
  }
  func.func @transform_8(%arg0: i32) -> (i32, i32) {
    %c0_i32 = arith.constant 0 : i32
    %c0_i32_0 = arith.constant 0 : i32
    return %arg0, %c0_i32 : i32, i32
  }
}

</mosaic_0001>

<llo_original>
// kernel: tpu_custom_call.1
$region0: #{tpu_custom_call.1}
  #allocation0 [shape = 'u32[]', space=smem, size = 0x4, offset = 0x4, fixed_abs, tag = 'smem constant byte address 0x4 - core index']
  #allocation1 [shape = 'u32[144,128]{1,0:T(1,128)}', space=vmem, size = 0x12000, scoped, tag = 'internal scratch']
  %s0 = inlined_call_operand.vmem [shape: s32[16,1], index: 0, kind: input, shape index: {}]
  %s1 = inlined_call_operand.vmem [shape: f32[16,2], index: 1, kind: input, shape index: {}]
  %s2 = inlined_call_operand.vmem [shape: f32[2,16], index: 2, kind: input, shape index: {}]
  %s3 = inlined_call_operand.vmem [shape: f32[128,32], index: 3, kind: input, shape index: {}]
  %s4 = inlined_call_operand.vmem [shape: f32[3,32,32], index: 4, kind: input, shape index: {}]
  %s5 = inlined_call_operand.vmem [shape: f32[1,32], index: 5, kind: input, shape index: {}]
  %s6 = inlined_call_operand.vmem [shape: f32[32,128], index: 6, kind: input, shape index: {}]
  %s7 = inlined_call_operand.vmem [shape: f32[1,128], index: 7, kind: input, shape index: {}]
  %s8 = inlined_call_operand.hbm [shape: f32[2,128], index: 8, kind: output, shape index: {}]
  %s9 = sld [smem:[#allocation0]]
  $region42: #{tpu_custom_call.1} parent=0
    _
  %s11 = ssub.s32 1, %s9
  %s12 = scalar_select 0, %s11, %s9
  $region1: #{tpu_custom_call.1} parent=0
    #allocation2 [shape = 'u8[1024]{0}', space=vmem, size = 0x400, scoped, tag = 'output window, operand 0, single buffered']
    #allocation3 [shape = 's32[1]{0}', space=sflag, size = 0x4, scoped, tag = 'scoped memory for tpu_custom_call.1']
    %13 = vsyncpa [#allocation3], 0
    // Predicated region
    $region2: #{tpu_custom_call.1} parent=1 // pred_check
      _
    $region3: #{tpu_custom_call.1} parent=1 // pred_check_branch
      %15 = sbr.rel (0) target = $region5
    $region4: #{tpu_custom_call.1} parent=1 // pred_region
      _
    $region5: #{tpu_custom_call.1} parent=1 // pred_fallthru
      _
    // Predicated region
    $region6: #{tpu_custom_call.1} parent=1 // pred_check
      _
    $region7: #{tpu_custom_call.1} parent=1 // pred_check_branch
      %17 = sbr.rel (0) target = $region9
    $region8: #{tpu_custom_call.1} parent=1 // pred_region
      _
    $region9: #{tpu_custom_call.1} parent=1 // pred_fallthru
      _
    // Predicated region
    $region10: #{tpu_custom_call.1} parent=1 // pred_check
      _
    $region11: #{tpu_custom_call.1} parent=1 // pred_check_branch
      %19 = sbr.rel (0) target = $region13
    $region12: #{tpu_custom_call.1} parent=1 // pred_region
      _
    $region13: #{tpu_custom_call.1} parent=1 // pred_fallthru
      _
    // Predicated region
    $region14: #{tpu_custom_call.1} parent=1 // pred_check
      _
    $region15: #{tpu_custom_call.1} parent=1 // pred_check_branch
      %21 = sbr.rel (0) target = $region17
    $region16: #{tpu_custom_call.1} parent=1 // pred_region
      _
    $region17: #{tpu_custom_call.1} parent=1 // pred_fallthru
      _
    // Predicated region
    $region18: #{tpu_custom_call.1} parent=1 // pred_check
      _
    $region19: #{tpu_custom_call.1} parent=1 // pred_check_branch
      %23 = sbr.rel (0) target = $region21
    $region20: #{tpu_custom_call.1} parent=1 // pred_region
      _
    $region21: #{tpu_custom_call.1} parent=1 // pred_fallthru
      _
    // Predicated region
    $region22: #{tpu_custom_call.1} parent=1 // pred_check
      _
    $region23: #{tpu_custom_call.1} parent=1 // pred_check_branch
      %25 = sbr.rel (0) target = $region25
    $region24: #{tpu_custom_call.1} parent=1 // pred_region
      _
    $region25: #{tpu_custom_call.1} parent=1 // pred_fallthru
      _
    // Predicated region
    $region26: #{tpu_custom_call.1} parent=1 // pred_check
      _
    $region27: #{tpu_custom_call.1} parent=1 // pred_check_branch
      %27 = sbr.rel (0) target = $region29
    $region28: #{tpu_custom_call.1} parent=1 // pred_region
      _
    $region29: #{tpu_custom_call.1} parent=1 // pred_fallthru
      _
    // Predicated region
    $region30: #{tpu_custom_call.1} parent=1 // pred_check
      _
    $region31: #{tpu_custom_call.1} parent=1 // pred_check_branch
      %29 = sbr.rel (0) target = $region33
    $region32: #{tpu_custom_call.1} parent=1 // pred_region
      _
    $region33: #{tpu_custom_call.1} parent=1 // pred_fallthru
      _
    %v30 = vld [vmem:[%s0] sm:$0xff]
    %v31 = vld [vmem:[%s0 + $0x8] sm:$0xff]
    %v32 = vlaneseq
    %v33 = vand.u32 %v32, 127
    %34 = vset.pattern.permute.xlu0 0
    %35 = vperm.xlu0 %34, %v30
    %v36 = vpop.permute.xlu0 %35
    %37 = vset.pattern.permute.xlu0 0
    %38 = vperm.xlu0 %37, %v31
    %v39 = vpop.permute.xlu0 %38
    %vm40 = vcmp.eq.s32.totalorder %v36, %v33
    %vm41 = vcmp.eq.s32.totalorder %v39, %v33
    %v42 = vsel %vm40, 1, 0
    %v43 = vsel %vm41, 1, 0
    %v44 = vcvt.s32.f32 %v42
    %v45 = vcvt.s32.f32 %v43
    %v46 = vld [vmem:[%s3] sm:$0xff]
    %v47 = vld [vmem:[%s3 + $0x8] sm:$0xff]
    %v48 = vld [vmem:[%s3 + $0x10] sm:$0xff]
    %v49 = vld [vmem:[%s3 + $0x18] sm:$0xff]
    %v50 = vld [vmem:[%s3 + $0x20] sm:$0xff]
    %v51 = vld [vmem:[%s3 + $0x28] sm:$0xff]
    %v52 = vld [vmem:[%s3 + $0x30] sm:$0xff]
    %v53 = vld [vmem:[%s3 + $0x38] sm:$0xff]
    %v54 = vld [vmem:[%s3 + $0x40] sm:$0xff]
    %v55 = vld [vmem:[%s3 + $0x48] sm:$0xff]
    %v56 = vld [vmem:[%s3 + $0x50] sm:$0xff]
    %v57 = vld [vmem:[%s3 + $0x58] sm:$0xff]
    %v58 = vld [vmem:[%s3 + $0x60] sm:$0xff]
    %v59 = vld [vmem:[%s3 + $0x68] sm:$0xff]
    %v60 = vld [vmem:[%s3 + $0x70] sm:$0xff]
    %v61 = vld [vmem:[%s3 + $0x78] sm:$0xff]
    %62 = vmatprep.subr.mxu0 0.0
    %63 = vmatpush1.msra.mxu0 %v46
    %64 = vmatprep.subr.mxu0 0.0
    %65 = vmatpush1.msra.mxu0 %v47
    %66 = vmatprep.subr.mxu0 0.0
    %67 = vmatpush1.msra.mxu0 %v48
    %68 = vmatprep.subr.mxu0 0.0
    %69 = vmatpush1.msra.mxu0 %v49
    %70 = vmatprep.subr.mxu0 0.0
    %71 = vmatpush1.msra.mxu0 %v50
    %72 = vmatprep.subr.mxu0 0.0
    %73 = vmatpush1.msra.mxu0 %v51
    %74 = vmatprep.subr.mxu0 0.0
    %75 = vmatpush1.msra.mxu0 %v52
    %76 = vmatprep.subr.mxu0 0.0
    %77 = vmatpush1.msra.mxu0 %v53
    %78 = vmatprep.subr.mxu0 0.0
    %79 = vmatpush1.msra.mxu0 %v54
    %80 = vmatprep.subr.mxu0 0.0
    %81 = vmatpush1.msra.mxu0 %v55
    %82 = vmatprep.subr.mxu0 0.0
    %83 = vmatpush1.msra.mxu0 %v56
    %84 = vmatprep.subr.mxu0 0.0
    %85 = vmatpush1.msra.mxu0 %v57
    %86 = vmatprep.subr.mxu0 0.0
    %87 = vmatpush1.msra.mxu0 %v58
    %88 = vmatprep.subr.mxu0 0.0
    %89 = vmatpush1.msra.mxu0 %v59
    %90 = vmatprep.subr.mxu0 0.0
    %91 = vmatpush1.msra.mxu0 %v60
    %92 = vmatprep.subr.mxu0 0.0
    %93 = vmatpush1.msra.mxu0 %v61
    %94 = vmatprep.subr.mxu0 0.0
    %95 = vmatpush1.msra.mxu0 0.0
    %96 = vmatprep.subr.mxu0 0.0
    %97 = vmatpush1.msra.mxu0 0.0
    %98 = vmatprep.subr.mxu0 0.0
    %99 = vmatpush1.msra.mxu0 0.0
    %100 = vmatprep.subr.mxu0 0.0
    %101 = vmatpush1.msra.mxu0 0.0
    %102 = vmatprep.subr.mxu0 0.0
    %103 = vmatpush1.msra.mxu0 0.0
    %104 = vmatprep.subr.mxu0 0.0
    %105 = vmatpush1.msra.mxu0 0.0
    %106 = vmatprep.subr.mxu0 0.0
    %107 = vmatpush1.msra.mxu0 0.0
    %108 = vmatprep.subr.mxu0 0.0
    %109 = vmatpush1.msra.mxu0 0.0
    %110 = vmatprep.subr.mxu0 0.0
    %111 = vmatpush1.msra.mxu0 0.0
    %112 = vmatprep.subr.mxu0 0.0
    %113 = vmatpush1.msra.mxu0 0.0
    %114 = vmatprep.subr.mxu0 0.0
    %115 = vmatpush1.msra.mxu0 0.0
    %116 = vmatprep.subr.mxu0 0.0
    %117 = vmatpush1.msra.mxu0 0.0
    %118 = vmatprep.subr.mxu0 0.0
    %119 = vmatpush1.msra.mxu0 0.0
    %120 = vmatprep.subr.mxu0 0.0
    %121 = vmatpush1.msra.mxu0 0.0
    %122 = vmatprep.subr.mxu0 0.0
    %123 = vmatpush1.msra.mxu0 0.0
    %124 = vmatprep.subr.mxu0 0.0
    %125 = vmatpush1.msra.mxu0 0.0
    %126 = vmatprep.mubr.f32.mxu0 0.0
    %127 = vmatmul.mubr.f32.gmra.mrb[0].mxu0 %v44
    %v128 = vpop.f32.mrb[0].mxu0
    %v129 = vadd.f32 0.0, %v128
    %v130 = vpop.f32.mrb[0].mxu0
    %131 = vmatprep.mubr.f32.mxu0 0.0
    %132 = vmatmul.mubr.f32.gmra.mrb[0].mxu0 %v45
    %v133 = vpop.f32.mrb[0].mxu0
    %v134 = vadd.f32 0.0, %v133
    %v135 = vpop.f32.mrb[0].mxu0
    %136 = vdwg.mxu0
    %v137 = vrot.slane %v129, 7
    %v138 = vrot.slane %v134, 7
    %v139 = vlaneseq
    %v140 = vshrl.u32 %v139, 7
    %vm141 = vcmp.lt.s32.totalorder %v140, 1
    %v142 = vsel %vm141, %v137, %v138
    %v143 = vsel %vm141, %v138, %v137
    %v144 = vld [vmem:[%s1] sm:$0xff]
    %v145 = vld [vmem:[%s1 + $0x8] sm:$0xff]
    %147 = vset.pattern.permute.xlu0 0
    %148 = vperm.xlu0 %147, %v144
    %v149 = vpop.permute.xlu0 %148
    %152 = vset.pattern.permute.xlu0 0
    %153 = vperm.xlu0 %152, %v145
    %v154 = vpop.permute.xlu0 %153
    %v156 = vmul.f32 %v143, %v149
    %v157 = vmul.f32 %v142, %v154
    %v158 = vrot.slane %v129, 1
    %v159 = vrot.slane %v134, 1
    %vm160 = vcmp.lt.s32.totalorder %v140, 7
    %v161 = vsel %vm160, %v158, %v159
    %v162 = vsel %vm160, %v159, %v158
    %163 = vset.pattern.permute.xlu0 1
    %164 = vperm.xlu0 %163, %v144
    %v165 = vpop.permute.xlu0 %164
    %167 = vset.pattern.permute.xlu0 1
    %168 = vperm.xlu0 %167, %v145
    %v169 = vpop.permute.xlu0 %168
    %v171 = vmul.f32 %v161, %v165
    %v172 = vmul.f32 %v162, %v169
    %s173 = scalar_lea.vmem %s4, 32
    %v174 = vld [vmem:[%s173] sm:$0xff]
    %v175 = vld [vmem:[%s173 + $0x8] sm:$0xff]
    %v176 = vld [vmem:[%s173 + $0x10] sm:$0xff]
    %v177 = vld [vmem:[%s173 + $0x18] sm:$0xff]
    %v178 = vld [vmem:[%s4] sm:$0xff]
    %v179 = vld [vmem:[%s4 + $0x8] sm:$0xff]
    %v180 = vld [vmem:[%s4 + $0x10] sm:$0xff]
    %v181 = vld [vmem:[%s4 + $0x18] sm:$0xff]
    %vm182 = vcmask 261120
    %v184 = vsel %vm182, %v156, 0
    %v187 = vsel %vm182, %v157, 0
    %189 = vmatprep.subr.mxu0 0.0
    %190 = vmatpush1.msra.mxu0 %v178
    %191 = vmatprep.subr.mxu0 0.0
    %192 = vmatpush1.msra.mxu0 %v179
    %193 = vmatprep.subr.mxu0 0.0
    %194 = vmatpush1.msra.mxu0 %v180
    %195 = vmatprep.subr.mxu0 0.0
    %196 = vmatpush1.msra.mxu0 %v181
    %197 = vmatprep.subr.mxu0 0.0
    %198 = vmatpush1.msra.mxu0 0.0
    %199 = vmatprep.subr.mxu0 0.0
    %200 = vmatpush1.msra.mxu0 0.0
    %201 = vmatprep.subr.mxu0 0.0
    %202 = vmatpush1.msra.mxu0 0.0
    %203 = vmatprep.subr.mxu0 0.0
    %204 = vmatpush1.msra.mxu0 0.0
    %205 = vmatprep.subr.mxu0 0.0
    %206 = vmatpush1.msra.mxu0 0.0
    %207 = vmatprep.subr.mxu0 0.0
    %208 = vmatpush1.msra.mxu0 0.0
    %209 = vmatprep.subr.mxu0 0.0
    %210 = vmatpush1.msra.mxu0 0.0
    %211 = vmatprep.subr.mxu0 0.0
    %212 = vmatpush1.msra.mxu0 0.0
    %213 = vmatprep.subr.mxu0 0.0
    %214 = vmatpush1.msra.mxu0 0.0
    %215 = vmatprep.subr.mxu0 0.0
    %216 = vmatpush1.msra.mxu0 0.0
    %217 = vmatprep.subr.mxu0 0.0
    %218 = vmatpush1.msra.mxu0 0.0
    %219 = vmatprep.subr.mxu0 0.0
    %220 = vmatpush1.msra.mxu0 0.0
    %221 = vmatprep.subr.mxu0 0.0
    %222 = vmatpush1.msra.mxu0 0.0
    %223 = vmatprep.subr.mxu0 0.0
    %224 = vmatpush1.msra.mxu0 0.0
    %225 = vmatprep.subr.mxu0 0.0
    %226 = vmatpush1.msra.mxu0 0.0
    %227 = vmatprep.subr.mxu0 0.0
    %228 = vmatpush1.msra.mxu0 0.0
    %229 = vmatprep.subr.mxu0 0.0
    %230 = vmatpush1.msra.mxu0 0.0
    %231 = vmatprep.subr.mxu0 0.0
    %232 = vmatpush1.msra.mxu0 0.0
    %233 = vmatprep.subr.mxu0 0.0
    %234 = vmatpush1.msra.mxu0 0.0
    %235 = vmatprep.subr.mxu0 0.0
    %236 = vmatpush1.msra.mxu0 0.0
    %237 = vmatprep.subr.mxu0 0.0
    %238 = vmatpush1.msra.mxu0 0.0
    %239 = vmatprep.subr.mxu0 0.0
    %240 = vmatpush1.msra.mxu0 0.0
    %241 = vmatprep.subr.mxu0 0.0
    %242 = vmatpush1.msra.mxu0 0.0
    %243 = vmatprep.subr.mxu0 0.0
    %244 = vmatpush1.msra.mxu0 0.0
    %245 = vmatprep.subr.mxu0 0.0
    %246 = vmatpush1.msra.mxu0 0.0
    %247 = vmatprep.subr.mxu0 0.0
    %248 = vmatpush1.msra.mxu0 0.0
    %249 = vmatprep.subr.mxu0 0.0
    %250 = vmatpush1.msra.mxu0 0.0
    %251 = vmatprep.subr.mxu0 0.0
    %252 = vmatpush1.msra.mxu0 0.0
    %253 = vmatprep.mubr.f32.mxu0 0.0
    %254 = vmatmul.mubr.f32.gmra.mrb[0].mxu0 %v184
    %v255 = vpop.f32.mrb[0].mxu0
    %v256 = vadd.f32 0.0, %v255
    %v257 = vpop.f32.mrb[0].mxu0
    %258 = vmatprep.mubr.f32.mxu0 0.0
    %259 = vmatmul.mubr.f32.gmra.mrb[0].mxu0 %v187
    %v260 = vpop.f32.mrb[0].mxu0
    %v261 = vadd.f32 0.0, %v260
    %v262 = vpop.f32.mrb[0].mxu0
    %263 = vdwg.mxu0
    %v265 = vsel %vm182, %v129, 0
    %v268 = vsel %vm182, %v134, 0
    %270 = vmatprep.subr.mxu0 0.0
    %271 = vmatpush1.msra.mxu0 %v174
    %272 = vmatprep.subr.mxu0 0.0
    %273 = vmatpush1.msra.mxu0 %v175
    %274 = vmatprep.subr.mxu0 0.0
    %275 = vmatpush1.msra.mxu0 %v176
    %276 = vmatprep.subr.mxu0 0.0
    %277 = vmatpush1.msra.mxu0 %v177
    %278 = vmatprep.subr.mxu0 0.0
    %279 = vmatpush1.msra.mxu0 0.0
    %280 = vmatprep.subr.mxu0 0.0
    %281 = vmatpush1.msra.mxu0 0.0
    %282 = vmatprep.subr.mxu0 0.0
    %283 = vmatpush1.msra.mxu0 0.0
    %284 = vmatprep.subr.mxu0 0.0
    %285 = vmatpush1.msra.mxu0 0.0
    %286 = vmatprep.subr.mxu0 0.0
    %287 = vmatpush1.msra.mxu0 0.0
    %288 = vmatprep.subr.mxu0 0.0
    %289 = vmatpush1.msra.mxu0 0.0
    %290 = vmatprep.subr.mxu0 0.0
    %291 = vmatpush1.msra.mxu0 0.0
    %292 = vmatprep.subr.mxu0 0.0
    %293 = vmatpush1.msra.mxu0 0.0
    %294 = vmatprep.subr.mxu0 0.0
    %295 = vmatpush1.msra.mxu0 0.0
    %296 = vmatprep.subr.mxu0 0.0
    %297 = vmatpush1.msra.mxu0 0.0
    %298 = vmatprep.subr.mxu0 0.0
    %299 = vmatpush1.msra.mxu0 0.0
    %300 = vmatprep.subr.mxu0 0.0
    %301 = vmatpush1.msra.mxu0 0.0
    %302 = vmatprep.subr.mxu0 0.0
    %303 = vmatpush1.msra.mxu0 0.0
    %304 = vmatprep.subr.mxu0 0.0
    %305 = vmatpush1.msra.mxu0 0.0
    %306 = vmatprep.subr.mxu0 0.0
    %307 = vmatpush1.msra.mxu0 0.0
    %308 = vmatprep.subr.mxu0 0.0
    %309 = vmatpush1.msra.mxu0 0.0
    %310 = vmatprep.subr.mxu0 0.0
    %311 = vmatpush1.msra.mxu0 0.0
    %312 = vmatprep.subr.mxu0 0.0
    %313 = vmatpush1.msra.mxu0 0.0
    %314 = vmatprep.subr.mxu0 0.0
    %315 = vmatpush1.msra.mxu0 0.0
    %316 = vmatprep.subr.mxu0 0.0
    %317 = vmatpush1.msra.mxu0 0.0
    %318 = vmatprep.subr.mxu0 0.0
    %319 = vmatpush1.msra.mxu0 0.0
    %320 = vmatprep.subr.mxu0 0.0
    %321 = vmatpush1.msra.mxu0 0.0
    %322 = vmatprep.subr.mxu0 0.0
    %323 = vmatpush1.msra.mxu0 0.0
    %324 = vmatprep.subr.mxu0 0.0
    %325 = vmatpush1.msra.mxu0 0.0
    %326 = vmatprep.subr.mxu0 0.0
    %327 = vmatpush1.msra.mxu0 0.0
    %328 = vmatprep.subr.mxu0 0.0
    %329 = vmatpush1.msra.mxu0 0.0
    %330 = vmatprep.subr.mxu0 0.0
    %331 = vmatpush1.msra.mxu0 0.0
    %332 = vmatprep.subr.mxu0 0.0
    %333 = vmatpush1.msra.mxu0 0.0
    %334 = vmatprep.mubr.f32.mxu0 0.0
    %335 = vmatmul.mubr.f32.gmra.mrb[0].mxu0 %v265
    %v336 = vpop.f32.mrb[0].mxu0
    %v337 = vadd.f32 %v256, %v336
    %v338 = vpop.f32.mrb[0].mxu0
    %339 = vmatprep.mubr.f32.mxu0 0.0
    %340 = vmatmul.mubr.f32.gmra.mrb[0].mxu0 %v268
    %v341 = vpop.f32.mrb[0].mxu0
    %v342 = vadd.f32 %v261, %v341
    %v343 = vpop.f32.mrb[0].mxu0
    %344 = vdwg.mxu0
    %s345 = scalar_lea.vmem %s4, 64
    %v346 = vld [vmem:[%s345] sm:$0xff]
    %v347 = vld [vmem:[%s345 + $0x8] sm:$0xff]
    %v348 = vld [vmem:[%s345 + $0x10] sm:$0xff]
    %v349 = vld [vmem:[%s345 + $0x18] sm:$0xff]
    %v351 = vsel %vm182, %v171, 0
    %v354 = vsel %vm182, %v172, 0
    %356 = vmatprep.subr.mxu0 0.0
    %357 = vmatpush1.msra.mxu0 %v346
    %358 = vmatprep.subr.mxu0 0.0
    %359 = vmatpush1.msra.mxu0 %v347
    %360 = vmatprep.subr.mxu0 0.0
    %361 = vmatpush1.msra.mxu0 %v348
    %362 = vmatprep.subr.mxu0 0.0
    %363 = vmatpush1.msra.mxu0 %v349
    %364 = vmatprep.subr.mxu0 0.0
    %365 = vmatpush1.msra.mxu0 0.0
    %366 = vmatprep.subr.mxu0 0.0
    %367 = vmatpush1.msra.mxu0 0.0
    %368 = vmatprep.subr.mxu0 0.0
    %369 = vmatpush1.msra.mxu0 0.0
    %370 = vmatprep.subr.mxu0 0.0
    %371 = vmatpush1.msra.mxu0 0.0
    %372 = vmatprep.subr.mxu0 0.0
    %373 = vmatpush1.msra.mxu0 0.0
    %374 = vmatprep.subr.mxu0 0.0
    %375 = vmatpush1.msra.mxu0 0.0
    %376 = vmatprep.subr.mxu0 0.0
    %377 = vmatpush1.msra.mxu0 0.0
    %378 = vmatprep.subr.mxu0 0.0
    %379 = vmatpush1.msra.mxu0 0.0
    %380 = vmatprep.subr.mxu0 0.0
    %381 = vmatpush1.msra.mxu0 0.0
    %382 = vmatprep.subr.mxu0 0.0
    %383 = vmatpush1.msra.mxu0 0.0
    %384 = vmatprep.subr.mxu0 0.0
    %385 = vmatpush1.msra.mxu0 0.0
    %386 = vmatprep.subr.mxu0 0.0
    %387 = vmatpush1.msra.mxu0 0.0
    %388 = vmatprep.subr.mxu0 0.0
    %389 = vmatpush1.msra.mxu0 0.0
    %390 = vmatprep.subr.mxu0 0.0
    %391 = vmatpush1.msra.mxu0 0.0
    %392 = vmatprep.subr.mxu0 0.0
    %393 = vmatpush1.msra.mxu0 0.0
    %394 = vmatprep.subr.mxu0 0.0
    %395 = vmatpush1.msra.mxu0 0.0
    %396 = vmatprep.subr.mxu0 0.0
    %397 = vmatpush1.msra.mxu0 0.0
    %398 = vmatprep.subr.mxu0 0.0
    %399 = vmatpush1.msra.mxu0 0.0
    %400 = vmatprep.subr.mxu0 0.0
    %401 = vmatpush1.msra.mxu0 0.0
    %402 = vmatprep.subr.mxu0 0.0
    %403 = vmatpush1.msra.mxu0 0.0
    %404 = vmatprep.subr.mxu0 0.0
    %405 = vmatpush1.msra.mxu0 0.0
    %406 = vmatprep.subr.mxu0 0.0
    %407 = vmatpush1.msra.mxu0 0.0
    %408 = vmatprep.subr.mxu0 0.0
    %409 = vmatpush1.msra.mxu0 0.0
    %410 = vmatprep.subr.mxu0 0.0
    %411 = vmatpush1.msra.mxu0 0.0
    %412 = vmatprep.subr.mxu0 0.0
    %413 = vmatpush1.msra.mxu0 0.0
    %414 = vmatprep.subr.mxu0 0.0
    %415 = vmatpush1.msra.mxu0 0.0
    %416 = vmatprep.subr.mxu0 0.0
    %417 = vmatpush1.msra.mxu0 0.0
    %418 = vmatprep.subr.mxu0 0.0
    %419 = vmatpush1.msra.mxu0 0.0
    %420 = vmatprep.mubr.f32.mxu0 0.0
    %421 = vmatmul.mubr.f32.gmra.mrb[0].mxu0 %v351
    %v422 = vpop.f32.mrb[0].mxu0
    %v423 = vadd.f32 0.0, %v422
    %v424 = vpop.f32.mrb[0].mxu0
    %425 = vmatprep.mubr.f32.mxu0 0.0
    %426 = vmatmul.mubr.f32.gmra.mrb[0].mxu0 %v354
    %v427 = vpop.f32.mrb[0].mxu0
    %v428 = vadd.f32 0.0, %v427
    %v429 = vpop.f32.mrb[0].mxu0
    %430 = vdwg.mxu0
    %v431 = vadd.f32 %v337, %v423
    %v432 = vadd.f32 %v342, %v428
    %v433 = vld [vmem:[%s5] sm:$0x1]
    %v435 = vlaneseq
    %v436 = vshrl.u32 %v435, 7
    %v437 = vsub.s32 0, %v436
    %v438 = vrot.slane %v433, %v437
    %v440 = vadd.f32 %v431, %v438
    %v441 = vadd.f32 %v432, %v438
    %v442 = vmax.f32 %v440, 0.0
    %v443 = vmax.f32 %v441, 0.0
    %v444 = vld [vmem:[%s2] sm:$0x3]
    %vm445 = vcmask 130048
    %v447 = vsel %vm445, %v444, 0
    %449 = vmatprep.subr.mxu0 0.0
    %450 = vmatpush1.msra.mxu0 %v442
    %451 = vmatprep.subr.mxu0 0.0
    %452 = vmatpush1.msra.mxu0 %v443
    %453 = vmatprep.subr.mxu0 0.0
    %454 = vmatpush1.msra.mxu0 0.0
    %455 = vmatprep.subr.mxu0 0.0
    %456 = vmatpush1.msra.mxu0 0.0
    %457 = vmatprep.subr.mxu0 0.0
    %458 = vmatpush1.msra.mxu0 0.0
    %459 = vmatprep.subr.mxu0 0.0
    %460 = vmatpush1.msra.mxu0 0.0
    %461 = vmatprep.subr.mxu0 0.0
    %462 = vmatpush1.msra.mxu0 0.0
    %463 = vmatprep.subr.mxu0 0.0
    %464 = vmatpush1.msra.mxu0 0.0
    %465 = vmatprep.subr.mxu0 0.0
    %466 = vmatpush1.msra.mxu0 0.0
    %467 = vmatprep.subr.mxu0 0.0
    %468 = vmatpush1.msra.mxu0 0.0
    %469 = vmatprep.subr.mxu0 0.0
    %470 = vmatpush1.msra.mxu0 0.0
    %471 = vmatprep.subr.mxu0 0.0
    %472 = vmatpush1.msra.mxu0 0.0
    %473 = vmatprep.subr.mxu0 0.0
    %474 = vmatpush1.msra.mxu0 0.0
    %475 = vmatprep.subr.mxu0 0.0
    %476 = vmatpush1.msra.mxu0 0.0
    %477 = vmatprep.subr.mxu0 0.0
    %478 = vmatpush1.msra.mxu0 0.0
    %479 = vmatprep.subr.mxu0 0.0
    %480 = vmatpush1.msra.mxu0 0.0
    %481 = vmatprep.subr.mxu0 0.0
    %482 = vmatpush1.msra.mxu0 0.0
    %483 = vmatprep.subr.mxu0 0.0
    %484 = vmatpush1.msra.mxu0 0.0
    %485 = vmatprep.subr.mxu0 0.0
    %486 = vmatpush1.msra.mxu0 0.0
    %487 = vmatprep.subr.mxu0 0.0
    %488 = vmatpush1.msra.mxu0 0.0
    %489 = vmatprep.subr.mxu0 0.0
    %490 = vmatpush1.msra.mxu0 0.0
    %491 = vmatprep.subr.mxu0 0.0
    %492 = vmatpush1.msra.mxu0 0.0
    %493 = vmatprep.subr.mxu0 0.0
    %494 = vmatpush1.msra.mxu0 0.0
    %495 = vmatprep.subr.mxu0 0.0
    %496 = vmatpush1.msra.mxu0 0.0
    %497 = vmatprep.subr.mxu0 0.0
    %498 = vmatpush1.msra.mxu0 0.0
    %499 = vmatprep.subr.mxu0 0.0
    %500 = vmatpush1.msra.mxu0 0.0
    %501 = vmatprep.subr.mxu0 0.0
    %502 = vmatpush1.msra.mxu0 0.0
    %503 = vmatprep.subr.mxu0 0.0
    %504 = vmatpush1.msra.mxu0 0.0
    %505 = vmatprep.subr.mxu0 0.0
    %506 = vmatpush1.msra.mxu0 0.0
    %507 = vmatprep.subr.mxu0 0.0
    %508 = vmatpush1.msra.mxu0 0.0
    %509 = vmatprep.subr.mxu0 0.0
    %510 = vmatpush1.msra.mxu0 0.0
    %511 = vmatprep.subr.mxu0 0.0
    %512 = vmatpush1.msra.mxu0 0.0
    %513 = vmatprep.mubr.f32.mxu0 0.0
    %514 = vmatmul.mubr.f32.gmra.mrb[0].mxu0 %v447
    %v515 = vpop.f32.mrb[0].mxu0
    %v516 = vadd.f32 0.0, %v515
    %v517 = vpop.f32.mrb[0].mxu0
    %518 = vdwg.mxu0
    %v519 = vmul.f32 %v516, 0.125
    %v520 = vld [vmem:[%s6] sm:$0xff]
    %v521 = vld [vmem:[%s6 + $0x8] sm:$0xff]
    %v522 = vld [vmem:[%s6 + $0x10] sm:$0xff]
    %v523 = vld [vmem:[%s6 + $0x18] sm:$0xff]
    %v524 = vld [vmem:[%s7] sm:$0x1]
    %v526 = vlaneseq
    %v527 = vshrl.u32 %v526, 7
    %v528 = vsub.s32 0, %v527
    %v529 = vrot.slane %v524, %v528
    %v532 = vsel %vm182, %v519, 0
    %534 = vmatprep.subr.mxu0 0.0
    %535 = vmatpush1.msra.mxu0 %v520
    %536 = vmatprep.subr.mxu0 0.0
    %537 = vmatpush1.msra.mxu0 %v521
    %538 = vmatprep.subr.mxu0 0.0
    %539 = vmatpush1.msra.mxu0 %v522
    %540 = vmatprep.subr.mxu0 0.0
    %541 = vmatpush1.msra.mxu0 %v523
    %542 = vmatprep.subr.mxu0 0.0
    %543 = vmatpush1.msra.mxu0 0.0
    %544 = vmatprep.subr.mxu0 0.0
    %545 = vmatpush1.msra.mxu0 0.0
    %546 = vmatprep.subr.mxu0 0.0
    %547 = vmatpush1.msra.mxu0 0.0
    %548 = vmatprep.subr.mxu0 0.0
    %549 = vmatpush1.msra.mxu0 0.0
    %550 = vmatprep.subr.mxu0 0.0
    %551 = vmatpush1.msra.mxu0 0.0
    %552 = vmatprep.subr.mxu0 0.0
    %553 = vmatpush1.msra.mxu0 0.0
    %554 = vmatprep.subr.mxu0 0.0
    %555 = vmatpush1.msra.mxu0 0.0
    %556 = vmatprep.subr.mxu0 0.0
    %557 = vmatpush1.msra.mxu0 0.0
    %558 = vmatprep.subr.mxu0 0.0
    %559 = vmatpush1.msra.mxu0 0.0
    %560 = vmatprep.subr.mxu0 0.0
    %561 = vmatpush1.msra.mxu0 0.0
    %562 = vmatprep.subr.mxu0 0.0
    %563 = vmatpush1.msra.mxu0 0.0
    %564 = vmatprep.subr.mxu0 0.0
    %565 = vmatpush1.msra.mxu0 0.0
    %566 = vmatprep.subr.mxu0 0.0
    %567 = vmatpush1.msra.mxu0 0.0
    %568 = vmatprep.subr.mxu0 0.0
    %569 = vmatpush1.msra.mxu0 0.0
    %570 = vmatprep.subr.mxu0 0.0
    %571 = vmatpush1.msra.mxu0 0.0
    %572 = vmatprep.subr.mxu0 0.0
    %573 = vmatpush1.msra.mxu0 0.0
    %574 = vmatprep.subr.mxu0 0.0
    %575 = vmatpush1.msra.mxu0 0.0
    %576 = vmatprep.subr.mxu0 0.0
    %577 = vmatpush1.msra.mxu0 0.0
    %578 = vmatprep.subr.mxu0 0.0
    %579 = vmatpush1.msra.mxu0 0.0
    %580 = vmatprep.subr.mxu0 0.0
    %581 = vmatpush1.msra.mxu0 0.0
    %582 = vmatprep.subr.mxu0 0.0
    %583 = vmatpush1.msra.mxu0 0.0
    %584 = vmatprep.subr.mxu0 0.0
    %585 = vmatpush1.msra.mxu0 0.0
    %586 = vmatprep.subr.mxu0 0.0
    %587 = vmatpush1.msra.mxu0 0.0
    %588 = vmatprep.subr.mxu0 0.0
    %589 = vmatpush1.msra.mxu0 0.0
    %590 = vmatprep.subr.mxu0 0.0
    %591 = vmatpush1.msra.mxu0 0.0
    %592 = vmatprep.subr.mxu0 0.0
    %593 = vmatpush1.msra.mxu0 0.0
    %594 = vmatprep.subr.mxu0 0.0
    %595 = vmatpush1.msra.mxu0 0.0
    %596 = vmatprep.subr.mxu0 0.0
    %597 = vmatpush1.msra.mxu0 0.0
    %598 = vmatprep.mubr.f32.mxu0 0.0
    %599 = vmatmul.mubr.f32.gmra.mrb[0].mxu0 %v532
    %v600 = vpop.f32.mrb[0].mxu0
    %v601 = vadd.f32 %v529, %v600
    %v602 = vpop.f32.mrb[0].mxu0
    %603 = vdwg.mxu0
    %604 = vst [vmem:[#allocation2] sm:$0x3] %v601
    // Predicated region
    $region34: #{tpu_custom_call.1} parent=1 // pred_check
      _
    $region35: #{tpu_custom_call.1} parent=1 // pred_check_branch
      %606 = sbr.rel (0) target = $region37
    $region36: #{tpu_custom_call.1} parent=1 // pred_region
      %s608 = ssub.s32 32, 32
      %609 = vsyncadd [#allocation3], %s608
      %s611 = sshll.u32 [#allocation2], 4
      %s612 = int_to_ptr.vmem [resolvable:$true] %s611
      %614 = dma.vmem_to_hbm [thread:$0]  %s612, 32, %s8, [#allocation3]
    $region37: #{tpu_custom_call.1} parent=1 // pred_fallthru
      _
    // Predicated region
    $region38: #{tpu_custom_call.1} parent=1 // pred_check
      _
    $region39: #{tpu_custom_call.1} parent=1 // pred_check_branch
      %616 = sbr.rel (0) target = $region41
    $region40: #{tpu_custom_call.1} parent=1 // pred_region
      %617 = dma.done [#allocation3], 32
    $region41: #{tpu_custom_call.1} parent=1 // pred_fallthru
      _
    %618 = vsyncpa [#allocation3], 1

// kernel: tpu_custom_call.1
$region0: #{tpu_custom_call.1}
  #allocation0 [shape = 'u32[]', space=smem, size = 0x4, offset = 0x4, fixed_abs, tag = 'smem constant byte address 0x4 - core index']
  #allocation1 [shape = 'u32[144,128]{1,0:T(1,128)}', space=vmem, size = 0x12000, scoped, tag = 'internal scratch']
  %s0 = inlined_call_operand.vmem [shape: s32[16,1], index: 0, kind: input, shape index: {}]
  %s1 = inlined_call_operand.vmem [shape: f32[16,2], index: 1, kind: input, shape index: {}]
  %s2 = inlined_call_operand.vmem [shape: f32[2,16], index: 2, kind: input, shape index: {}]
  %s3 = inlined_call_operand.vmem [shape: f32[128,32], index: 3, kind: input, shape index: {}]
  %s4 = inlined_call_operand.vmem [shape: f32[3,32,32], index: 4, kind: input, shape index: {}]
  %s5 = inlined_call_operand.vmem [shape: f32[1,32], index: 5, kind: input, shape index: {}]
  %s6 = inlined_call_operand.vmem [shape: f32[32,128], index: 6, kind: input, shape index: {}]
  %s7 = inlined_call_operand.vmem [shape: f32[1,128], index: 7, kind: input, shape index: {}]
  %s8 = inlined_call_operand.hbm [shape: f32[2,128], index: 8, kind: output, shape index: {}]
  %s9 = sld [smem:[#allocation0]]
  $region42: #{tpu_custom_call.1} parent=0
    _
  %s11 = ssub.s32 1, %s9
  %s12 = scalar_select 0, %s11, %s9
  $region1: #{tpu_custom_call.1} parent=0
    #allocation2 [shape = 'u8[1024]{0}', space=vmem, size = 0x400, scoped, tag = 'output window, operand 0, single buffered']
    #allocation3 [shape = 's32[1]{0}', space=sflag, size = 0x4, scoped, tag = 'scoped memory for tpu_custom_call.1']
    %13 = vsyncpa [#allocation3], 0
    // Predicated region
    $region2: #{tpu_custom_call.1} parent=1 // pred_check
      _
    $region3: #{tpu_custom_call.1} parent=1 // pred_check_branch
      %15 = sbr.rel (0) target = $region5
    $region4: #{tpu_custom_call.1} parent=1 // pred_region
      _
    $region5: #{tpu_custom_call.1} parent=1 // pred_fallthru
      _
    // Predicated region
    $region6: #{tpu_custom_call.1} parent=1 // pred_check
      _
    $region7: #{tpu_custom_call.1} parent=1 // pred_check_branch
      %17 = sbr.rel (0) target = $region9
    $region8: #{tpu_custom_call.1} parent=1 // pred_region
      _
    $region9: #{tpu_custom_call.1} parent=1 // pred_fallthru
      _
    // Predicated region
    $region10: #{tpu_custom_call.1} parent=1 // pred_check
      _
    $region11: #{tpu_custom_call.1} parent=1 // pred_check_branch
      %19 = sbr.rel (0) target = $region13
    $region12: #{tpu_custom_call.1} parent=1 // pred_region
      _
    $region13: #{tpu_custom_call.1} parent=1 // pred_fallthru
      _
    // Predicated region
    $region14: #{tpu_custom_call.1} parent=1 // pred_check
      _
    $region15: #{tpu_custom_call.1} parent=1 // pred_check_branch
      %21 = sbr.rel (0) target = $region17
    $region16: #{tpu_custom_call.1} parent=1 // pred_region
      _
    $region17: #{tpu_custom_call.1} parent=1 // pred_fallthru
      _
    // Predicated region
    $region18: #{tpu_custom_call.1} parent=1 // pred_check
      _
    $region19: #{tpu_custom_call.1} parent=1 // pred_check_branch
      %23 = sbr.rel (0) target = $region21
    $region20: #{tpu_custom_call.1} parent=1 // pred_region
      _
    $region21: #{tpu_custom_call.1} parent=1 // pred_fallthru
      _
    // Predicated region
    $region22: #{tpu_custom_call.1} parent=1 // pred_check
      _
    $region23: #{tpu_custom_call.1} parent=1 // pred_check_branch
      %25 = sbr.rel (0) target = $region25
    $region24: #{tpu_custom_call.1} parent=1 // pred_region
      _
    $region25: #{tpu_custom_call.1} parent=1 // pred_fallthru
      _
    // Predicated region
    $region26: #{tpu_custom_call.1} parent=1 // pred_check
      _
    $region27: #{tpu_custom_call.1} parent=1 // pred_check_branch
      %27 = sbr.rel (0) target = $region29
    $region28: #{tpu_custom_call.1} parent=1 // pred_region
      _
    $region29: #{tpu_custom_call.1} parent=1 // pred_fallthru
      _
    // Predicated region
    $region30: #{tpu_custom_call.1} parent=1 // pred_check
      _
    $region31: #{tpu_custom_call.1} parent=1 // pred_check_branch
      %29 = sbr.rel (0) target = $region33
    $region32: #{tpu_custom_call.1} parent=1 // pred_region
      _
    $region33: #{tpu_custom_call.1} parent=1 // pred_fallthru
      _
    %v30 = vld [vmem:[%s0] sm:$0xff]
    %v31 = vld [vmem:[%s0 + $0x8] sm:$0xff]
    %v32 = vlaneseq
    %v33 = vand.u32 %v32, 127
    %34 = vset.pattern.permute.xlu0 0
    %35 = vperm.xlu0 %34, %v30
    %v36 = vpop.permute.xlu0 %35
    %37 = vset.pattern.permute.xlu0 0
    %38 = vperm.xlu0 %37, %v31
    %v39 = vpop.permute.xlu0 %38
    %vm40 = vcmp.eq.s32.totalorder %v36, %v33
    %vm41 = vcmp.eq.s32.totalorder %v39, %v33
    %v42 = vsel %vm40, 1, 0
    %v43 = vsel %vm41, 1, 0
    %v44 = vcvt.s32.f32 %v42
    %v45 = vcvt.s32.f32 %v43
    %v46 = vld [vmem:[%s3] sm:$0xff]
    %v47 = vld [vmem:[%s3 + $0x8] sm:$0xff]
    %v48 = vld [vmem:[%s3 + $0x10] sm:$0xff]
    %v49 = vld [vmem:[%s3 + $0x18] sm:$0xff]
    %v50 = vld [vmem:[%s3 + $0x20] sm:$0xff]
    %v51 = vld [vmem:[%s3 + $0x28] sm:$0xff]
    %v52 = vld [vmem:[%s3 + $0x30] sm:$0xff]
    %v53 = vld [vmem:[%s3 + $0x38] sm:$0xff]
    %v54 = vld [vmem:[%s3 + $0x40] sm:$0xff]
    %v55 = vld [vmem:[%s3 + $0x48] sm:$0xff]
    %v56 = vld [vmem:[%s3 + $0x50] sm:$0xff]
    %v57 = vld [vmem:[%s3 + $0x58] sm:$0xff]
    %v58 = vld [vmem:[%s3 + $0x60] sm:$0xff]
    %v59 = vld [vmem:[%s3 + $0x68] sm:$0xff]
    %v60 = vld [vmem:[%s3 + $0x70] sm:$0xff]
    %v61 = vld [vmem:[%s3 + $0x78] sm:$0xff]
    %62 = vmatprep.subr.mxu0 0.0
    %63 = vmatpush1.msra.mxu0 %v46
    %64 = vmatprep.subr.mxu0 0.0
    %65 = vmatpush1.msra.mxu0 %v47
    %66 = vmatprep.subr.mxu0 0.0
    %67 = vmatpush1.msra.mxu0 %v48
    %68 = vmatprep.subr.mxu0 0.0
    %69 = vmatpush1.msra.mxu0 %v49
    %70 = vmatprep.subr.mxu0 0.0
    %71 = vmatpush1.msra.mxu0 %v50
    %72 = vmatprep.subr.mxu0 0.0
    %73 = vmatpush1.msra.mxu0 %v51
    %74 = vmatprep.subr.mxu0 0.0
    %75 = vmatpush1.msra.mxu0 %v52
    %76 = vmatprep.subr.mxu0 0.0
    %77 = vmatpush1.msra.mxu0 %v53
    %78 = vmatprep.subr.mxu0 0.0
    %79 = vmatpush1.msra.mxu0 %v54
    %80 = vmatprep.subr.mxu0 0.0
    %81 = vmatpush1.msra.mxu0 %v55
    %82 = vmatprep.subr.mxu0 0.0
    %83 = vmatpush1.msra.mxu0 %v56
    %84 = vmatprep.subr.mxu0 0.0
    %85 = vmatpush1.msra.mxu0 %v57
    %86 = vmatprep.subr.mxu0 0.0
    %87 = vmatpush1.msra.mxu0 %v58
    %88 = vmatprep.subr.mxu0 0.0
    %89 = vmatpush1.msra.mxu0 %v59
    %90 = vmatprep.subr.mxu0 0.0
    %91 = vmatpush1.msra.mxu0 %v60
    %92 = vmatprep.subr.mxu0 0.0
    %93 = vmatpush1.msra.mxu0 %v61
    %94 = vmatprep.subr.mxu0 0.0
    %95 = vmatpush1.msra.mxu0 0.0
    %96 = vmatprep.subr.mxu0 0.0
    %97 = vmatpush1.msra.mxu0 0.0
    %98 = vmatprep.subr.mxu0 0.0
    %99 = vmatpush1.msra.mxu0 0.0
    %100 = vmatprep.subr.mxu0 0.0
    %101 = vmatpush1.msra.mxu0 0.0
    %102 = vmatprep.subr.mxu0 0.0
    %103 = vmatpush1.msra.mxu0 0.0
    %104 = vmatprep.subr.mxu0 0.0
    %105 = vmatpush1.msra.mxu0 0.0
    %106 = vmatprep.subr.mxu0 0.0
    %107 = vmatpush1.msra.mxu0 0.0
    %108 = vmatprep.subr.mxu0 0.0
    %109 = vmatpush1.msra.mxu0 0.0
    %110 = vmatprep.subr.mxu0 0.0
    %111 = vmatpush1.msra.mxu0 0.0
    %112 = vmatprep.subr.mxu0 0.0
    %113 = vmatpush1.msra.mxu0 0.0
    %114 = vmatprep.subr.mxu0 0.0
    %115 = vmatpush1.msra.mxu0 0.0
    %116 = vmatprep.subr.mxu0 0.0
    %117 = vmatpush1.msra.mxu0 0.0
    %118 = vmatprep.subr.mxu0 0.0
    %119 = vmatpush1.msra.mxu0 0.0
    %120 = vmatprep.subr.mxu0 0.0
    %121 = vmatpush1.msra.mxu0 0.0
    %122 = vmatprep.subr.mxu0 0.0
    %123 = vmatpush1.msra.mxu0 0.0
    %124 = vmatprep.subr.mxu0 0.0
    %125 = vmatpush1.msra.mxu0 0.0
    %126 = vmatprep.mubr.f32.mxu0 0.0
    %127 = vmatmul.mubr.f32.gmra.mrb[0].mxu0 %v44
    %v128 = vpop.f32.mrb[0].mxu0
    %v129 = vadd.f32 0.0, %v128
    %v130 = vpop.f32.mrb[0].mxu0
    %131 = vmatprep.mubr.f32.mxu0 0.0
    %132 = vmatmul.mubr.f32.gmra.mrb[0].mxu0 %v45
    %v133 = vpop.f32.mrb[0].mxu0
    %v134 = vadd.f32 0.0, %v133
    %v135 = vpop.f32.mrb[0].mxu0
    %136 = vdwg.mxu0
    %v137 = vrot.slane %v129, 7
    %v138 = vrot.slane %v134, 7
    %v139 = vlaneseq
    %v140 = vshrl.u32 %v139, 7
    %vm141 = vcmp.lt.s32.totalorder %v140, 1
    %v142 = vsel %vm141, %v137, %v138
    %v143 = vsel %vm141, %v138, %v137
    %v144 = vld [vmem:[%s1] sm:$0xff]
    %v145 = vld [vmem:[%s1 + $0x8] sm:$0xff]
    %147 = vset.pattern.permute.xlu0 0
    %148 = vperm.xlu0 %147, %v144
    %v149 = vpop.permute.xlu0 %148
    %152 = vset.pattern.permute.xlu0 0
    %153 = vperm.xlu0 %152, %v145
    %v154 = vpop.permute.xlu0 %153
    %v156 = vmul.f32 %v143, %v149
    %v157 = vmul.f32 %v142, %v154
    %v158 = vrot.slane %v129, 1
    %v159 = vrot.slane %v134, 1
    %vm160 = vcmp.lt.s32.totalorder %v140, 7
    %v161 = vsel %vm160, %v158, %v159
    %v162 = vsel %vm160, %v159, %v158
    %163 = vset.pattern.permute.xlu0 1
    %164 = vperm.xlu0 %163, %v144
    %v165 = vpop.permute.xlu0 %164
    %167 = vset.pattern.permute.xlu0 1
    %168 = vperm.xlu0 %167, %v145
    %v169 = vpop.permute.xlu0 %168
    %v171 = vmul.f32 %v161, %v165
    %v172 = vmul.f32 %v162, %v169
    %s173 = scalar_lea.vmem %s4, 32
    %v174 = vld [vmem:[%s173] sm:$0xff]
    %v175 = vld [vmem:[%s173 + $0x8] sm:$0xff]
    %v176 = vld [vmem:[%s173 + $0x10] sm:$0xff]
    %v177 = vld [vmem:[%s173 + $0x18] sm:$0xff]
    %v178 = vld [vmem:[%s4] sm:$0xff]
    %v179 = vld [vmem:[%s4 + $0x8] sm:$0xff]
    %v180 = vld [vmem:[%s4 + $0x10] sm:$0xff]
    %v181 = vld [vmem:[%s4 + $0x18] sm:$0xff]
    %vm182 = vcmask 261120
    %v184 = vsel %vm182, %v156, 0
    %v187 = vsel %vm182, %v157, 0
    %189 = vmatprep.subr.mxu0 0.0
    %190 = vmatpush1.msra.mxu0 %v178
    %191 = vmatprep.subr.mxu0 0.0
    %192 = vmatpush1.msra.mxu0 %v179
    %193 = vmatprep.subr.mxu0 0.0
    %194 = vmatpush1.msra.mxu0 %v180
    %195 = vmatprep.subr.mxu0 0.0
    %196 = vmatpush1.msra.mxu0 %v181
    %197 = vmatprep.subr.mxu0 0.0
    %198 = vmatpush1.msra.mxu0 0.0
    %199 = vmatprep.subr.mxu0 0.0
    %200 = vmatpush1.msra.mxu0 0.0
    %201 = vmatprep.subr.mxu0 0.0
    %202 = vmatpush1.msra.mxu0 0.0
    %203 = vmatprep.subr.mxu0 0.0
    %204 = vmatpush1.msra.mxu0 0.0
    %205 = vmatprep.subr.mxu0 0.0
    %206 = vmatpush1.msra.mxu0 0.0
    %207 = vmatprep.subr.mxu0 0.0
    %208 = vmatpush1.msra.mxu0 0.0
    %209 = vmatprep.subr.mxu0 0.0
    %210 = vmatpush1.msra.mxu0 0.0
    %211 = vmatprep.subr.mxu0 0.0
    %212 = vmatpush1.msra.mxu0 0.0
    %213 = vmatprep.subr.mxu0 0.0
    %214 = vmatpush1.msra.mxu0 0.0
    %215 = vmatprep.subr.mxu0 0.0
    %216 = vmatpush1.msra.mxu0 0.0
    %217 = vmatprep.subr.mxu0 0.0
    %218 = vmatpush1.msra.mxu0 0.0
    %219 = vmatprep.subr.mxu0 0.0
    %220 = vmatpush1.msra.mxu0 0.0
    %221 = vmatprep.subr.mxu0 0.0
    %222 = vmatpush1.msra.mxu0 0.0
    %223 = vmatprep.subr.mxu0 0.0
    %224 = vmatpush1.msra.mxu0 0.0
    %225 = vmatprep.subr.mxu0 0.0
    %226 = vmatpush1.msra.mxu0 0.0
    %227 = vmatprep.subr.mxu0 0.0
    %228 = vmatpush1.msra.mxu0 0.0
    %229 = vmatprep.subr.mxu0 0.0
    %230 = vmatpush1.msra.mxu0 0.0
    %231 = vmatprep.subr.mxu0 0.0
    %232 = vmatpush1.msra.mxu0 0.0
    %233 = vmatprep.subr.mxu0 0.0
    %234 = vmatpush1.msra.mxu0 0.0
    %235 = vmatprep.subr.mxu0 0.0
    %236 = vmatpush1.msra.mxu0 0.0
    %237 = vmatprep.subr.mxu0 0.0
    %238 = vmatpush1.msra.mxu0 0.0
    %239 = vmatprep.subr.mxu0 0.0
    %240 = vmatpush1.msra.mxu0 0.0
    %241 = vmatprep.subr.mxu0 0.0
    %242 = vmatpush1.msra.mxu0 0.0
    %243 = vmatprep.subr.mxu0 0.0
    %244 = vmatpush1.msra.mxu0 0.0
    %245 = vmatprep.subr.mxu0 0.0
    %246 = vmatpush1.msra.mxu0 0.0
    %247 = vmatprep.subr.mxu0 0.0
    %248 = vmatpush1.msra.mxu0 0.0
    %249 = vmatprep.subr.mxu0 0.0
    %250 = vmatpush1.msra.mxu0 0.0
    %251 = vmatprep.subr.mxu0 0.0
    %252 = vmatpush1.msra.mxu0 0.0
    %253 = vmatprep.mubr.f32.mxu0 0.0
    %254 = vmatmul.mubr.f32.gmra.mrb[0].mxu0 %v184
    %v255 = vpop.f32.mrb[0].mxu0
    %v256 = vadd.f32 0.0, %v255
    %v257 = vpop.f32.mrb[0].mxu0
    %258 = vmatprep.mubr.f32.mxu0 0.0
    %259 = vmatmul.mubr.f32.gmra.mrb[0].mxu0 %v187
    %v260 = vpop.f32.mrb[0].mxu0
    %v261 = vadd.f32 0.0, %v260
    %v262 = vpop.f32.mrb[0].mxu0
    %263 = vdwg.mxu0
    %v265 = vsel %vm182, %v129, 0
    %v268 = vsel %vm182, %v134, 0
    %270 = vmatprep.subr.mxu0 0.0
    %271 = vmatpush1.msra.mxu0 %v174
    %272 = vmatprep.subr.mxu0 0.0
    %273 = vmatpush1.msra.mxu0 %v175
    %274 = vmatprep.subr.mxu0 0.0
    %275 = vmatpush1.msra.mxu0 %v176
    %276 = vmatprep.subr.mxu0 0.0
    %277 = vmatpush1.msra.mxu0 %v177
    %278 = vmatprep.subr.mxu0 0.0
    %279 = vmatpush1.msra.mxu0 0.0
    %280 = vmatprep.subr.mxu0 0.0
    %281 = vmatpush1.msra.mxu0 0.0
    %282 = vmatprep.subr.mxu0 0.0
    %283 = vmatpush1.msra.mxu0 0.0
    %284 = vmatprep.subr.mxu0 0.0
    %285 = vmatpush1.msra.mxu0 0.0
    %286 = vmatprep.subr.mxu0 0.0
    %287 = vmatpush1.msra.mxu0 0.0
    %288 = vmatprep.subr.mxu0 0.0
    %289 = vmatpush1.msra.mxu0 0.0
    %290 = vmatprep.subr.mxu0 0.0
    %291 = vmatpush1.msra.mxu0 0.0
    %292 = vmatprep.subr.mxu0 0.0
    %293 = vmatpush1.msra.mxu0 0.0
    %294 = vmatprep.subr.mxu0 0.0
    %295 = vmatpush1.msra.mxu0 0.0
    %296 = vmatprep.subr.mxu0 0.0
    %297 = vmatpush1.msra.mxu0 0.0
    %298 = vmatprep.subr.mxu0 0.0
    %299 = vmatpush1.msra.mxu0 0.0
    %300 = vmatprep.subr.mxu0 0.0
    %301 = vmatpush1.msra.mxu0 0.0
    %302 = vmatprep.subr.mxu0 0.0
    %303 = vmatpush1.msra.mxu0 0.0
    %304 = vmatprep.subr.mxu0 0.0
    %305 = vmatpush1.msra.mxu0 0.0
    %306 = vmatprep.subr.mxu0 0.0
    %307 = vmatpush1.msra.mxu0 0.0
    %308 = vmatprep.subr.mxu0 0.0
    %309 = vmatpush1.msra.mxu0 0.0
    %310 = vmatprep.subr.mxu0 0.0
    %311 = vmatpush1.msra.mxu0 0.0
    %312 = vmatprep.subr.mxu0 0.0
    %313 = vmatpush1.msra.mxu0 0.0
    %314 = vmatprep.subr.mxu0 0.0
    %315 = vmatpush1.msra.mxu0 0.0
    %316 = vmatprep.subr.mxu0 0.0
    %317 = vmatpush1.msra.mxu0 0.0
    %318 = vmatprep.subr.mxu0 0.0
    %319 = vmatpush1.msra.mxu0 0.0
    %320 = vmatprep.subr.mxu0 0.0
    %321 = vmatpush1.msra.mxu0 0.0
    %322 = vmatprep.subr.mxu0 0.0
    %323 = vmatpush1.msra.mxu0 0.0
    %324 = vmatprep.subr.mxu0 0.0
    %325 = vmatpush1.msra.mxu0 0.0
    %326 = vmatprep.subr.mxu0 0.0
    %327 = vmatpush1.msra.mxu0 0.0
    %328 = vmatprep.subr.mxu0 0.0
    %329 = vmatpush1.msra.mxu0 0.0
    %330 = vmatprep.subr.mxu0 0.0
    %331 = vmatpush1.msra.mxu0 0.0
    %332 = vmatprep.subr.mxu0 0.0
    %333 = vmatpush1.msra.mxu0 0.0
    %334 = vmatprep.mubr.f32.mxu0 0.0
    %335 = vmatmul.mubr.f32.gmra.mrb[0].mxu0 %v265
    %v336 = vpop.f32.mrb[0].mxu0
    %v337 = vadd.f32 %v256, %v336
    %v338 = vpop.f32.mrb[0].mxu0
    %339 = vmatprep.mubr.f32.mxu0 0.0
    %340 = vmatmul.mubr.f32.gmra.mrb[0].mxu0 %v268
    %v341 = vpop.f32.mrb[0].mxu0
    %v342 = vadd.f32 %v261, %v341
    %v343 = vpop.f32.mrb[0].mxu0
    %344 = vdwg.mxu0
    %s345 = scalar_lea.vmem %s4, 64
    %v346 = vld [vmem:[%s345] sm:$0xff]
    %v347 = vld [vmem:[%s345 + $0x8] sm:$0xff]
    %v348 = vld [vmem:[%s345 + $0x10] sm:$0xff]
    %v349 = vld [vmem:[%s345 + $0x18] sm:$0xff]
    %v351 = vsel %vm182, %v171, 0
    %v354 = vsel %vm182, %v172, 0
    %356 = vmatprep.subr.mxu0 0.0
    %357 = vmatpush1.msra.mxu0 %v346
    %358 = vmatprep.subr.mxu0 0.0
    %359 = vmatpush1.msra.mxu0 %v347
    %360 = vmatprep.subr.mxu0 0.0
    %361 = vmatpush1.msra.mxu0 %v348
    %362 = vmatprep.subr.mxu0 0.0
    %363 = vmatpush1.msra.mxu0 %v349
    %364 = vmatprep.subr.mxu0 0.0
    %365 = vmatpush1.msra.mxu0 0.0
    %366 = vmatprep.subr.mxu0 0.0
    %367 = vmatpush1.msra.mxu0 0.0
    %368 = vmatprep.subr.mxu0 0.0
    %369 = vmatpush1.msra.mxu0 0.0
    %370 = vmatprep.subr.mxu0 0.0
    %371 = vmatpush1.msra.mxu0 0.0
    %372 = vmatprep.subr.mxu0 0.0
    %373 = vmatpush1.msra.mxu0 0.0
    %374 = vmatprep.subr.mxu0 0.0
    %375 = vmatpush1.msra.mxu0 0.0
    %376 = vmatprep.subr.mxu0 0.0
    %377 = vmatpush1.msra.mxu0 0.0
    %378 = vmatprep.subr.mxu0 0.0
    %379 = vmatpush1.msra.mxu0 0.0
    %380 = vmatprep.subr.mxu0 0.0
    %381 = vmatpush1.msra.mxu0 0.0
    %382 = vmatprep.subr.mxu0 0.0
    %383 = vmatpush1.msra.mxu0 0.0
    %384 = vmatprep.subr.mxu0 0.0
    %385 = vmatpush1.msra.mxu0 0.0
    %386 = vmatprep.subr.mxu0 0.0
    %387 = vmatpush1.msra.mxu0 0.0
    %388 = vmatprep.subr.mxu0 0.0
    %389 = vmatpush1.msra.mxu0 0.0
    %390 = vmatprep.subr.mxu0 0.0
    %391 = vmatpush1.msra.mxu0 0.0
    %392 = vmatprep.subr.mxu0 0.0
    %393 = vmatpush1.msra.mxu0 0.0
    %394 = vmatprep.subr.mxu0 0.0
    %395 = vmatpush1.msra.mxu0 0.0
    %396 = vmatprep.subr.mxu0 0.0
    %397 = vmatpush1.msra.mxu0 0.0
    %398 = vmatprep.subr.mxu0 0.0
    %399 = vmatpush1.msra.mxu0 0.0
    %400 = vmatprep.subr.mxu0 0.0
    %401 = vmatpush1.msra.mxu0 0.0
    %402 = vmatprep.subr.mxu0 0.0
    %403 = vmatpush1.msra.mxu0 0.0
    %404 = vmatprep.subr.mxu0 0.0
    %405 = vmatpush1.msra.mxu0 0.0
    %406 = vmatprep.subr.mxu0 0.0
    %407 = vmatpush1.msra.mxu0 0.0
    %408 = vmatprep.subr.mxu0 0.0
    %409 = vmatpush1.msra.mxu0 0.0
    %410 = vmatprep.subr.mxu0 0.0
    %411 = vmatpush1.msra.mxu0 0.0
    %412 = vmatprep.subr.mxu0 0.0
    %413 = vmatpush1.msra.mxu0 0.0
    %414 = vmatprep.subr.mxu0 0.0
    %415 = vmatpush1.msra.mxu0 0.0
    %416 = vmatprep.subr.mxu0 0.0
    %417 = vmatpush1.msra.mxu0 0.0
    %418 = vmatprep.subr.mxu0 0.0
    %419 = vmatpush1.msra.mxu0 0.0
    %420 = vmatprep.mubr.f32.mxu0 0.0
    %421 = vmatmul.mubr.f32.gmra.mrb[0].mxu0 %v351
    %v422 = vpop.f32.mrb[0].mxu0
    %v423 = vadd.f32 0.0, %v422
    %v424 = vpop.f32.mrb[0].mxu0
    %425 = vmatprep.mubr.f32.mxu0 0.0
    %426 = vmatmul.mubr.f32.gmra.mrb[0].mxu0 %v354
    %v427 = vpop.f32.mrb[0].mxu0
    %v428 = vadd.f32 0.0, %v427
    %v429 = vpop.f32.mrb[0].mxu0
    %430 = vdwg.mxu0
    %v431 = vadd.f32 %v337, %v423
    %v432 = vadd.f32 %v342, %v428
    %v433 = vld [vmem:[%s5] sm:$0x1]
    %v435 = vlaneseq
    %v436 = vshrl.u32 %v435, 7
    %v437 = vsub.s32 0, %v436
    %v438 = vrot.slane %v433, %v437
    %v440 = vadd.f32 %v431, %v438
    %v441 = vadd.f32 %v432, %v438
    %v442 = vmax.f32 %v440, 0.0
    %v443 = vmax.f32 %v441, 0.0
    %v444 = vld [vmem:[%s2] sm:$0x3]
    %vm445 = vcmask 130048
    %v447 = vsel %vm445, %v444, 0
    %449 = vmatprep.subr.mxu0 0.0
    %450 = vmatpush1.msra.mxu0 %v442
    %451 = vmatprep.subr.mxu0 0.0
    %452 = vmatpush1.msra.mxu0 %v443
    %453 = vmatprep.subr.mxu0 0.0
    %454 = vmatpush1.msra.mxu0 0.0
    %455 = vmatprep.subr.mxu0 0.0
    %456 = vmatpush1.msra.mxu0 0.0
    %457 = vmatprep.subr.mxu0 0.0
    %458 = vmatpush1.msra.mxu0 0.0
    %459 = vmatprep.subr.mxu0 0.0
    %460 = vmatpush1.msra.mxu0 0.0
    %461 = vmatprep.subr.mxu0 0.0
    %462 = vmatpush1.msra.mxu0 0.0
    %463 = vmatprep.subr.mxu0 0.0
    %464 = vmatpush1.msra.mxu0 0.0
    %465 = vmatprep.subr.mxu0 0.0
    %466 = vmatpush1.msra.mxu0 0.0
    %467 = vmatprep.subr.mxu0 0.0
    %468 = vmatpush1.msra.mxu0 0.0
    %469 = vmatprep.subr.mxu0 0.0
    %470 = vmatpush1.msra.mxu0 0.0
    %471 = vmatprep.subr.mxu0 0.0
    %472 = vmatpush1.msra.mxu0 0.0
    %473 = vmatprep.subr.mxu0 0.0
    %474 = vmatpush1.msra.mxu0 0.0
    %475 = vmatprep.subr.mxu0 0.0
    %476 = vmatpush1.msra.mxu0 0.0
    %477 = vmatprep.subr.mxu0 0.0
    %478 = vmatpush1.msra.mxu0 0.0
    %479 = vmatprep.subr.mxu0 0.0
    %480 = vmatpush1.msra.mxu0 0.0
    %481 = vmatprep.subr.mxu0 0.0
    %482 = vmatpush1.msra.mxu0 0.0
    %483 = vmatprep.subr.mxu0 0.0
    %484 = vmatpush1.msra.mxu0 0.0
    %485 = vmatprep.subr.mxu0 0.0
    %486 = vmatpush1.msra.mxu0 0.0
    %487 = vmatprep.subr.mxu0 0.0
    %488 = vmatpush1.msra.mxu0 0.0
    %489 = vmatprep.subr.mxu0 0.0
    %490 = vmatpush1.msra.mxu0 0.0
    %491 = vmatprep.subr.mxu0 0.0
    %492 = vmatpush1.msra.mxu0 0.0
    %493 = vmatprep.subr.mxu0 0.0
    %494 = vmatpush1.msra.mxu0 0.0
    %495 = vmatprep.subr.mxu0 0.0
    %496 = vmatpush1.msra.mxu0 0.0
    %497 = vmatprep.subr.mxu0 0.0
    %498 = vmatpush1.msra.mxu0 0.0
    %499 = vmatprep.subr.mxu0 0.0
    %500 = vmatpush1.msra.mxu0 0.0
    %501 = vmatprep.subr.mxu0 0.0
    %502 = vmatpush1.msra.mxu0 0.0
    %503 = vmatprep.subr.mxu0 0.0
    %504 = vmatpush1.msra.mxu0 0.0
    %505 = vmatprep.subr.mxu0 0.0
    %506 = vmatpush1.msra.mxu0 0.0
    %507 = vmatprep.subr.mxu0 0.0
    %508 = vmatpush1.msra.mxu0 0.0
    %509 = vmatprep.subr.mxu0 0.0
    %510 = vmatpush1.msra.mxu0 0.0
    %511 = vmatprep.subr.mxu0 0.0
    %512 = vmatpush1.msra.mxu0 0.0
    %513 = vmatprep.mubr.f32.mxu0 0.0
    %514 = vmatmul.mubr.f32.gmra.mrb[0].mxu0 %v447
    %v515 = vpop.f32.mrb[0].mxu0
    %v516 = vadd.f32 0.0, %v515
    %v517 = vpop.f32.mrb[0].mxu0
    %518 = vdwg.mxu0
    %v519 = vmul.f32 %v516, 0.125
    %v520 = vld [vmem:[%s6] sm:$0xff]
    %v521 = vld [vmem:[%s6 + $0x8] sm:$0xff]
    %v522 = vld [vmem:[%s6 + $0x10] sm:$0xff]
    %v523 = vld [vmem:[%s6 + $0x18] sm:$0xff]
    %v524 = vld [vmem:[%s7] sm:$0x1]
    %v526 = vlaneseq
    %v527 = vshrl.u32 %v526, 7
    %v528 = vsub.s32 0, %v527
    %v529 = vrot.slane %v524, %v528
    %v532 = vsel %vm182, %v519, 0
    %534 = vmatprep.subr.mxu0 0.0
    %535 = vmatpush1.msra.mxu0 %v520
    %536 = vmatprep.subr.mxu0 0.0
    %537 = vmatpush1.msra.mxu0 %v521
    %538 = vmatprep.subr.mxu0 0.0
    %539 = vmatpush1.msra.mxu0 %v522
    %540 = vmatprep.subr.mxu0 0.0
    %541 = vmatpush1.msra.mxu0 %v523
    %542 = vmatprep.subr.mxu0 0.0
    %543 = vmatpush1.msra.mxu0 0.0
    %544 = vmatprep.subr.mxu0 0.0
    %545 = vmatpush1.msra.mxu0 0.0
    %546 = vmatprep.subr.mxu0 0.0
    %547 = vmatpush1.msra.mxu0 0.0
    %548 = vmatprep.subr.mxu0 0.0
    %549 = vmatpush1.msra.mxu0 0.0
    %550 = vmatprep.subr.mxu0 0.0
    %551 = vmatpush1.msra.mxu0 0.0
    %552 = vmatprep.subr.mxu0 0.0
    %553 = vmatpush1.msra.mxu0 0.0
    %554 = vmatprep.subr.mxu0 0.0
    %555 = vmatpush1.msra.mxu0 0.0
    %556 = vmatprep.subr.mxu0 0.0
    %557 = vmatpush1.msra.mxu0 0.0
    %558 = vmatprep.subr.mxu0 0.0
    %559 = vmatpush1.msra.mxu0 0.0
    %560 = vmatprep.subr.mxu0 0.0
    %561 = vmatpush1.msra.mxu0 0.0
    %562 = vmatprep.subr.mxu0 0.0
    %563 = vmatpush1.msra.mxu0 0.0
    %564 = vmatprep.subr.mxu0 0.0
    %565 = vmatpush1.msra.mxu0 0.0
    %566 = vmatprep.subr.mxu0 0.0
    %567 = vmatpush1.msra.mxu0 0.0
    %568 = vmatprep.subr.mxu0 0.0
    %569 = vmatpush1.msra.mxu0 0.0
    %570 = vmatprep.subr.mxu0 0.0
    %571 = vmatpush1.msra.mxu0 0.0
    %572 = vmatprep.subr.mxu0 0.0
    %573 = vmatpush1.msra.mxu0 0.0
    %574 = vmatprep.subr.mxu0 0.0
    %575 = vmatpush1.msra.mxu0 0.0
    %576 = vmatprep.subr.mxu0 0.0
    %577 = vmatpush1.msra.mxu0 0.0
    %578 = vmatprep.subr.mxu0 0.0
    %579 = vmatpush1.msra.mxu0 0.0
    %580 = vmatprep.subr.mxu0 0.0
    %581 = vmatpush1.msra.mxu0 0.0
    %582 = vmatprep.subr.mxu0 0.0
    %583 = vmatpush1.msra.mxu0 0.0
    %584 = vmatprep.subr.mxu0 0.0
    %585 = vmatpush1.msra.mxu0 0.0
    %586 = vmatprep.subr.mxu0 0.0
    %587 = vmatpush1.msra.mxu0 0.0
    %588 = vmatprep.subr.mxu0 0.0
    %589 = vmatpush1.msra.mxu0 0.0
    %590 = vmatprep.subr.mxu0 0.0
    %591 = vmatpush1.msra.mxu0 0.0
    %592 = vmatprep.subr.mxu0 0.0
    %593 = vmatpush1.msra.mxu0 0.0
    %594 = vmatprep.subr.mxu0 0.0
    %595 = vmatpush1.msra.mxu0 0.0
    %596 = vmatprep.subr.mxu0 0.0
    %597 = vmatpush1.msra.mxu0 0.0
    %598 = vmatprep.mubr.f32.mxu0 0.0
    %599 = vmatmul.mubr.f32.gmra.mrb[0].mxu0 %v532
    %v600 = vpop.f32.mrb[0].mxu0
    %v601 = vadd.f32 %v529, %v600
    %v602 = vpop.f32.mrb[0].mxu0
    %603 = vdwg.mxu0
    %604 = vst [vmem:[#allocation2] sm:$0x3] %v601
    // Predicated region
    $region34: #{tpu_custom_call.1} parent=1 // pred_check
      _
    $region35: #{tpu_custom_call.1} parent=1 // pred_check_branch
      %606 = sbr.rel (0) target = $region37
    $region36: #{tpu_custom_call.1} parent=1 // pred_region
      %s608 = ssub.s32 32, 32
      %609 = vsyncadd [#allocation3], %s608
      %s611 = sshll.u32 [#allocation2], 4
      %s612 = int_to_ptr.vmem [resolvable:$true] %s611
      %614 = dma.vmem_to_hbm [thread:$0]  %s612, 32, %s8, [#allocation3]
    $region37: #{tpu_custom_call.1} parent=1 // pred_fallthru
      _
    // Predicated region
    $region38: #{tpu_custom_call.1} parent=1 // pred_check
      _
    $region39: #{tpu_custom_call.1} parent=1 // pred_check_branch
      %616 = sbr.rel (0) target = $region41
    $region40: #{tpu_custom_call.1} parent=1 // pred_region
      %617 = dma.done [#allocation3], 32
    $region41: #{tpu_custom_call.1} parent=1 // pred_fallthru
      _
    %618 = vsyncpa [#allocation3], 1

</llo_original>
